<compile_context>
chip_gen: v5e
topology: v5e:2x2
jax: 0.10.0
libtpu: 0.0.40
codegen_flags: <defaults>
</compile_context>

<pallas_src>
import functools

import jax
import jax.numpy as jnp
from jax.experimental import pallas as pl
from jax.experimental.pallas import tpu as pltpu


# ----------------------------------------------------------------------------
# Fused Pallas kernel
# ----------------------------------------------------------------------------

def _silu(v):
    return v * jax.nn.sigmoid(v)


def _csp_fused_kernel(x_ref, w12_ref, s1_ref, b1_ref,
                      wm1_ref, sm1_ref, bm1_ref,
                      wm2_ref, sm2_ref, bm2_ref, mask_ref,
                      w3_ref, sbn_ref, bbn_ref,
                      w4_ref, s4_ref, b4_ref,
                      o_ref, *, H, W, c_):
    """Whole BottleneckCSP forward for one batch image, channel-major (C, H*W)."""
    f32, bf16 = jnp.float32, jnp.bfloat16
    HW = H * W

    x = x_ref[0].astype(bf16)                                          # (C1, HW)

    # cv1 + cv2: one MXU pass over x against the concatenated (2c_, C1) weight.
    y12 = jnp.dot(w12_ref[...], x, preferred_element_type=f32)         # (2c_, HW)
    y2 = y12[c_:, :]                                                    # cv2 (plain conv)
    y = _silu(y12[:c_, :] * s1_ref[...] + b1_ref[...])                  # cv1 + BN + SiLU

    # Bottleneck m.cv1: 1x1 conv + BN + SiLU.
    t = jnp.dot(wm1_ref[...], y.astype(bf16), preferred_element_type=f32)
    t = _silu(t * sm1_ref[...] + bm1_ref[...])                          # (c_, HW)

    # Bottleneck m.cv2: 3x3 conv (pad=1) as ONE im2col matmul with K = 9*c_.
    # Each tap is a lane-contiguous static slice of a zero-extended flat row buffer,
    # multiplied by a precomputed validity mask (handles the SAME-padding border).
    zpad = jnp.zeros((c_, W + 1), f32)
    t_ext = jnp.concatenate([zpad, t, zpad], axis=1)                    # (c_, HW + 2W + 2)
    mask = mask_ref[...]                                                # (9, HW) of 0/1
    taps = []
    for dy in range(3):
        for dx in range(3):
            k = dy * 3 + dx
            off = dy * W + dx
            taps.append(t_ext[:, off:off + HW] * mask[k:k + 1, :])
    patches = jnp.concatenate(taps, axis=0).astype(bf16)                # (9c_, HW)
    conv = jnp.dot(wm2_ref[...], patches, preferred_element_type=f32)   # (c_, HW)
    ym = y + _silu(conv * sm2_ref[...] + bm2_ref[...])                  # residual add

    # cv3 (plain 1x1 conv) on the bottleneck output.
    y1 = jnp.dot(w3_ref[...], ym.astype(bf16), preferred_element_type=f32)

    # concat(y1, y2) + BN + LeakyReLU(0.1) + cv4 (1x1 + BN + SiLU), all in VMEM.
    z = jnp.concatenate([y1, y2], axis=0) * sbn_ref[...] + bbn_ref[...]  # (2c_, HW)
    z = jnp.where(z >= 0, z, 0.1 * z)
    out = jnp.dot(w4_ref[...], z.astype(bf16), preferred_element_type=f32)
    out = _silu(out * s4_ref[...] + b4_ref[...])                         # (c2, HW)
    o_ref[0] = out.astype(o_ref.dtype)


# ----------------------------------------------------------------------------
# Wrapper
# ----------------------------------------------------------------------------

def _conv_valid_masks(H, W):
    """(9, H*W) 0/1 masks marking in-bounds taps of a 3x3 SAME-padded conv."""
    yy = jnp.arange(H).reshape(H, 1)
    xx = jnp.arange(W).reshape(1, W)
    rows = []
    for dy in range(3):
        for dx in range(3):
            r, c = dy - 1, dx - 1
            valid = ((yy + r >= 0) & (yy + r < H) & (xx + c >= 0) & (xx + c < W))
            rows.append(valid.reshape(1, H * W))
    return jnp.concatenate(rows, axis=0).astype(jnp.float32)


def bottleneck_csp_forward(x_nchw, p):
    B, C1, H, W = x_nchw.shape
    HW = H * W
    c_ = p["cv1_w"].shape[1]          # static: derived from weight shape, not a traced value
    c2 = p["cv4_w"].shape[1]
    bf16 = jnp.bfloat16

    # Channel-major view: NCHW -> (B, C, H*W) is a free reshape (no transpose, no pad).
    x_cm = x_nchw.reshape(B, C1, HW)

    # Kernel-form weights: (Cout, Cin) channel-major, bf16 for the MXU.
    w12 = jnp.concatenate([p["cv1_w"].T, p["cv2_w"].T], axis=0).astype(bf16)     # (2c_, C1)
    wm1 = p["m_cv1_w"].T.astype(bf16)                                            # (c_, c_)
    wm2 = jnp.transpose(p["m_cv2_w"], (3, 0, 1, 2)).reshape(c_, 9 * c_).astype(bf16)
    w3 = p["cv3_w"].T.astype(bf16)                                               # (c_, c_)
    w4 = p["cv4_w"].T.astype(bf16)                                               # (c2, 2c_)

    col = lambda a: a.reshape(-1, 1).astype(jnp.float32)
    s1, b1 = col(p["cv1_s"]), col(p["cv1_b"])
    sm1, bm1 = col(p["m_cv1_s"]), col(p["m_cv1_b"])
    sm2, bm2 = col(p["m_cv2_s"]), col(p["m_cv2_b"])
    sbn, bbn = col(p["bn_s"]), col(p["bn_b"])
    s4, b4 = col(p["cv4_s"]), col(p["cv4_b"])
    mask = _conv_valid_masks(H, W)                                               # (9, HW)

    def full(a):
        nd = a.ndim
        return pl.BlockSpec(a.shape, lambda b: (0,) * nd)

    out = pl.pallas_call(
        functools.partial(_csp_fused_kernel, H=H, W=W, c_=c_),
        out_shape=jax.ShapeDtypeStruct((B, c2, HW), x_nchw.dtype),
        grid=(B,),
        in_specs=[
            pl.BlockSpec((1, C1, HW), lambda b: (b, 0, 0)),
            full(w12), full(s1), full(b1),
            full(wm1), full(sm1), full(bm1),
            full(wm2), full(sm2), full(bm2), full(mask),
            full(w3), full(sbn), full(bbn),
            full(w4), full(s4), full(b4),
        ],
        out_specs=pl.BlockSpec((1, c2, HW), lambda b: (b, 0, 0)),
        compiler_params=pltpu.CompilerParams(dimension_semantics=("parallel",)),
    )(x_cm, w12, s1, b1, wm1, sm1, bm1, wm2, sm2, bm2, mask, w3, sbn, bbn, w4, s4, b4)

    return out.reshape(B, c2, H, W)


# ----------------------------------------------------------------------------
# Parameter construction (deterministic, synthetic; eval-mode BN fused to scale/bias)
# ----------------------------------------------------------------------------

def fuse_bn(gamma, beta, mean, var, eps=1e-5):
    scale = gamma / jnp.sqrt(var + eps)
    bias = beta - mean * scale
    return (scale.reshape(1, -1).astype(jnp.float32),
            bias.reshape(1, -1).astype(jnp.float32))


def make_params(c1, c2, e=0.5, seed=0):
    c_ = int(c2 * e)
    key = jax.random.PRNGKey(seed)
    ks = iter(jax.random.split(key, 64))

    def w(shape, s=0.2):
        return (jax.random.normal(next(ks), shape) * s).astype(jnp.float32)

    def bn(c):
        gamma = 1.0 + 0.1 * jax.random.normal(next(ks), (c,))
        beta = 0.05 * jax.random.normal(next(ks), (c,))
        mean = 0.1 * jax.random.normal(next(ks), (c,))
        var = 0.7 + 0.3 * jnp.abs(jax.random.normal(next(ks), (c,)))
        return fuse_bn(gamma, beta, mean, var)

    p = {}
    p["cv1_w"] = w((c1, c_)); p["cv1_s"], p["cv1_b"] = bn(c_)
    p["cv2_w"] = w((c1, c_))                      # plain conv, no BN/act
    p["cv3_w"] = w((c_, c_))                      # plain conv, no BN/act
    p["cv4_w"] = w((2 * c_, c2)); p["cv4_s"], p["cv4_b"] = bn(c2)
    p["bn_s"], p["bn_b"] = bn(2 * c_)             # BN over concat, then LeakyReLU(0.1)
    p["m_cv1_w"] = w((c_, c_)); p["m_cv1_s"], p["m_cv1_b"] = bn(c_)
    p["m_cv2_w"] = w((3, 3, c_, c_)); p["m_cv2_s"], p["m_cv2_b"] = bn(c_)
    return p                                       # note: no Python ints in the pytree


# ----------------------------------------------------------------------------
# Pure-JAX reference (same bf16-matmul / f32-accumulate recipe) for verification
# ----------------------------------------------------------------------------

def reference_forward(x_nchw, p):
    f32, bf16 = jnp.float32, jnp.bfloat16
    x = jnp.transpose(x_nchw, (0, 2, 3, 1)).astype(f32)        # NHWC

    def silu(v): return v * jax.nn.sigmoid(v)

    def pw(v, w):
        return jnp.einsum("bhwc,cd->bhwd", v.astype(bf16), w.astype(bf16),
                          preferred_element_type=f32)

    def aff(v, s, b): return v * s.reshape(1, 1, 1, -1) + b.reshape(1, 1, 1, -1)

    y = silu(aff(pw(x, p["cv1_w"]), p["cv1_s"], p["cv1_b"]))
    t = silu(aff(pw(y, p["m_cv1_w"]), p["m_cv1_s"], p["m_cv1_b"]))
    conv = jax.lax.conv_general_dilated(
        t.astype(bf16), p["m_cv2_w"].astype(bf16), window_strides=(1, 1),
        padding="SAME", dimension_numbers=("NHWC", "HWIO", "NHWC"),
        preferred_element_type=f32)
    y = y + silu(aff(conv, p["m_cv2_s"], p["m_cv2_b"]))
    y1 = pw(y, p["cv3_w"])
    y2 = pw(x, p["cv2_w"])
    cat = jnp.concatenate([y1, y2], axis=-1)
    z = aff(cat, p["bn_s"], p["bn_b"])
    z = jnp.where(z >= 0, z, 0.1 * z)
    out = silu(aff(pw(z, p["cv4_w"]), p["cv4_s"], p["cv4_b"]))
    return jnp.transpose(out, (0, 3, 1, 2))


# ----------------------------------------------------------------------------
# Main
# ----------------------------------------------------------------------------

if __name__ == "__main__":
    B, C1, C2, H, W = 2, 8, 8, 16, 16   # c_ = C2 * 0.5 = 4
    params = make_params(C1, C2, e=0.5, seed=0)

    x = jax.random.normal(jax.random.PRNGKey(0), (B, C1, H, W), jnp.float32)

    out = jax.jit(bottleneck_csp_forward)(x, params)
    out = jax.block_until_ready(out)

    ref = reference_forward(x, params)
    assert out.shape == (B, C2, H, W), out.shape
    max_err = float(jnp.max(jnp.abs(out - ref)))
    assert max_err < 2e-3, max_err

    print("KERNEL_OK")
</pallas_src>

<mosaic_0001>
module attributes {stable_mosaic.version = 11 : i64} {
  func.func @_csp_fused_kernel(%arg0: i32, %arg1: memref<1x8x256xf32, #tpu.memory_space<vmem>>, %arg2: memref<8x8xbf16, #tpu.memory_space<vmem>>, %arg3: memref<4x1xf32, #tpu.memory_space<vmem>>, %arg4: memref<4x1xf32, #tpu.memory_space<vmem>>, %arg5: memref<4x4xbf16, #tpu.memory_space<vmem>>, %arg6: memref<4x1xf32, #tpu.memory_space<vmem>>, %arg7: memref<4x1xf32, #tpu.memory_space<vmem>>, %arg8: memref<4x36xbf16, #tpu.memory_space<vmem>>, %arg9: memref<4x1xf32, #tpu.memory_space<vmem>>, %arg10: memref<4x1xf32, #tpu.memory_space<vmem>>, %arg11: memref<9x256xf32, #tpu.memory_space<vmem>>, %arg12: memref<4x4xbf16, #tpu.memory_space<vmem>>, %arg13: memref<8x1xf32, #tpu.memory_space<vmem>>, %arg14: memref<8x1xf32, #tpu.memory_space<vmem>>, %arg15: memref<8x8xbf16, #tpu.memory_space<vmem>>, %arg16: memref<8x1xf32, #tpu.memory_space<vmem>>, %arg17: memref<8x1xf32, #tpu.memory_space<vmem>>, %arg18: memref<1x8x256xf32, #tpu.memory_space<vmem>>) attributes {dimension_semantics = [#tpu.dimension_semantics<parallel>], iteration_bounds = array<i64: 2>, scalar_prefetch = 0 : i64, scratch_operands = 0 : i64, tpu.core_type = #tpu.core_type<tc>, window_params = [{transform_indices = @transform_0, window_bounds = array<i64: 1, 8, 256>}, {pipeline_mode = #tpu.pipeline_mode<synchronous>, transform_indices = @transform_1, window_bounds = array<i64: 8, 8>}, {pipeline_mode = #tpu.pipeline_mode<synchronous>, transform_indices = @transform_2, window_bounds = array<i64: 4, 1>}, {pipeline_mode = #tpu.pipeline_mode<synchronous>, transform_indices = @transform_3, window_bounds = array<i64: 4, 1>}, {pipeline_mode = #tpu.pipeline_mode<synchronous>, transform_indices = @transform_4, window_bounds = array<i64: 4, 4>}, {pipeline_mode = #tpu.pipeline_mode<synchronous>, transform_indices = @transform_5, window_bounds = array<i64: 4, 1>}, {pipeline_mode = #tpu.pipeline_mode<synchronous>, transform_indices = @transform_6, window_bounds = array<i64: 4, 1>}, {pipeline_mode = #tpu.pipeline_mode<synchronous>, transform_indices = @transform_7, window_bounds = array<i64: 4, 36>}, {pipeline_mode = #tpu.pipeline_mode<synchronous>, transform_indices = @transform_8, window_bounds = array<i64: 4, 1>}, {pipeline_mode = #tpu.pipeline_mode<synchronous>, transform_indices = @transform_9, window_bounds = array<i64: 4, 1>}, {pipeline_mode = #tpu.pipeline_mode<synchronous>, transform_indices = @transform_10, window_bounds = array<i64: 9, 256>}, {pipeline_mode = #tpu.pipeline_mode<synchronous>, transform_indices = @transform_11, window_bounds = array<i64: 4, 4>}, {pipeline_mode = #tpu.pipeline_mode<synchronous>, transform_indices = @transform_12, window_bounds = array<i64: 8, 1>}, {pipeline_mode = #tpu.pipeline_mode<synchronous>, transform_indices = @transform_13, window_bounds = array<i64: 8, 1>}, {pipeline_mode = #tpu.pipeline_mode<synchronous>, transform_indices = @transform_14, window_bounds = array<i64: 8, 8>}, {pipeline_mode = #tpu.pipeline_mode<synchronous>, transform_indices = @transform_15, window_bounds = array<i64: 8, 1>}, {pipeline_mode = #tpu.pipeline_mode<synchronous>, transform_indices = @transform_16, window_bounds = array<i64: 8, 1>}, {transform_indices = @transform_17, window_bounds = array<i64: 1, 8, 256>}]} {
    %c0 = arith.constant 0 : index
    %c0_0 = arith.constant 0 : index
    %c0_1 = arith.constant 0 : index
    %0 = vector.load %arg1[%c0, %c0_0, %c0_1] : memref<1x8x256xf32, #tpu.memory_space<vmem>>, vector<1x8x256xf32>
    %1 = vector.shape_cast %0 : vector<1x8x256xf32> to vector<8x256xf32>
    %2 = arith.truncf %1 : vector<8x256xf32> to vector<8x256xbf16>
    %c0_2 = arith.constant 0 : index
    %c0_3 = arith.constant 0 : index
    %3 = vector.load %arg2[%c0_2, %c0_3] : memref<8x8xbf16, #tpu.memory_space<vmem>>, vector<8x8xbf16>
    %cst = arith.constant dense<0.000000e+00> : vector<8x256xf32>
    %4 = tpu.matmul %3, %2, %cst {dimension_numbers = #tpu.dot_dimension_numbers<[1], [0], [0], [1], [0, 0, 1, 1], [], []>} : vector<8x8xbf16>, vector<8x256xbf16>, vector<8x256xf32> -> vector<8x256xf32>
    %5 = vector.extract_strided_slice %4 {offsets = [4, 0], sizes = [4, 256], strides = [1, 1]} : vector<8x256xf32> to vector<4x256xf32>
    %6 = vector.extract_strided_slice %4 {offsets = [0, 0], sizes = [4, 256], strides = [1, 1]} : vector<8x256xf32> to vector<4x256xf32>
    %c0_4 = arith.constant 0 : index
    %c0_5 = arith.constant 0 : index
    %7 = vector.load %arg3[%c0_4, %c0_5] : memref<4x1xf32, #tpu.memory_space<vmem>>, vector<4x1xf32>
    %8 = vector.broadcast %7 : vector<4x1xf32> to vector<4x256xf32>
    %9 = arith.mulf %6, %8 : vector<4x256xf32>
    %c0_6 = arith.constant 0 : index
    %c0_7 = arith.constant 0 : index
    %10 = vector.load %arg4[%c0_6, %c0_7] : memref<4x1xf32, #tpu.memory_space<vmem>>, vector<4x1xf32>
    %11 = vector.broadcast %10 : vector<4x1xf32> to vector<4x256xf32>
    %12 = arith.addf %9, %11 : vector<4x256xf32>
    %13 = arith.negf %12 : vector<4x256xf32>
    %14 = math.exp %13 : vector<4x256xf32>
    %cst_8 = arith.constant 1.000000e+00 : f32
    %15 = vector.broadcast %cst_8 : f32 to vector<4x256xf32>
    %16 = arith.addf %15, %14 : vector<4x256xf32>
    %17 = arith.divf %15, %16 : vector<4x256xf32>
    %18 = arith.mulf %12, %17 : vector<4x256xf32>
    %c0_9 = arith.constant 0 : index
    %c0_10 = arith.constant 0 : index
    %19 = vector.load %arg5[%c0_9, %c0_10] : memref<4x4xbf16, #tpu.memory_space<vmem>>, vector<4x4xbf16>
    %20 = arith.truncf %18 : vector<4x256xf32> to vector<4x256xbf16>
    %cst_11 = arith.constant dense<0.000000e+00> : vector<4x256xf32>
    %21 = tpu.matmul %19, %20, %cst_11 {dimension_numbers = #tpu.dot_dimension_numbers<[1], [0], [0], [1], [0, 0, 1, 1], [], []>} : vector<4x4xbf16>, vector<4x256xbf16>, vector<4x256xf32> -> vector<4x256xf32>
    %c0_12 = arith.constant 0 : index
    %c0_13 = arith.constant 0 : index
    %22 = vector.load %arg6[%c0_12, %c0_13] : memref<4x1xf32, #tpu.memory_space<vmem>>, vector<4x1xf32>
    %23 = vector.broadcast %22 : vector<4x1xf32> to vector<4x256xf32>
    %24 = arith.mulf %21, %23 : vector<4x256xf32>
    %c0_14 = arith.constant 0 : index
    %c0_15 = arith.constant 0 : index
    %25 = vector.load %arg7[%c0_14, %c0_15] : memref<4x1xf32, #tpu.memory_space<vmem>>, vector<4x1xf32>
    %26 = vector.broadcast %25 : vector<4x1xf32> to vector<4x256xf32>
    %27 = arith.addf %24, %26 : vector<4x256xf32>
    %28 = arith.negf %27 : vector<4x256xf32>
    %29 = math.exp %28 : vector<4x256xf32>
    %cst_16 = arith.constant 1.000000e+00 : f32
    %30 = vector.broadcast %cst_16 : f32 to vector<4x256xf32>
    %31 = arith.addf %30, %29 : vector<4x256xf32>
    %32 = arith.divf %30, %31 : vector<4x256xf32>
    %33 = arith.mulf %27, %32 : vector<4x256xf32>
    %cst_17 = arith.constant 0.000000e+00 : f32
    %34 = vector.broadcast %cst_17 : f32 to vector<4x17xf32>
    %35 = tpu.concatenate %34, %33, %34 in 1 : vector<4x17xf32>, vector<4x256xf32>, vector<4x17xf32> -> vector<4x290xf32>
    %c0_18 = arith.constant 0 : index
    %c0_19 = arith.constant 0 : index
    %36 = vector.load %arg11[%c0_18, %c0_19] : memref<9x256xf32, #tpu.memory_space<vmem>>, vector<9x256xf32>
    %37 = vector.extract_strided_slice %35 {offsets = [0, 0], sizes = [4, 256], strides = [1, 1]} : vector<4x290xf32> to vector<4x256xf32>
    %38 = vector.extract_strided_slice %36 {offsets = [0, 0], sizes = [1, 256], strides = [1, 1]} : vector<9x256xf32> to vector<1x256xf32>
    %39 = vector.broadcast %38 : vector<1x256xf32> to vector<4x256xf32>
    %40 = arith.mulf %37, %39 : vector<4x256xf32>
    %41 = vector.extract_strided_slice %35 {offsets = [0, 1], sizes = [4, 256], strides = [1, 1]} : vector<4x290xf32> to vector<4x256xf32>
    %42 = vector.extract_strided_slice %36 {offsets = [1, 0], sizes = [1, 256], strides = [1, 1]} : vector<9x256xf32> to vector<1x256xf32>
    %43 = vector.broadcast %42 : vector<1x256xf32> to vector<4x256xf32>
    %44 = arith.mulf %41, %43 : vector<4x256xf32>
    %45 = vector.extract_strided_slice %35 {offsets = [0, 2], sizes = [4, 256], strides = [1, 1]} : vector<4x290xf32> to vector<4x256xf32>
    %46 = vector.extract_strided_slice %36 {offsets = [2, 0], sizes = [1, 256], strides = [1, 1]} : vector<9x256xf32> to vector<1x256xf32>
    %47 = vector.broadcast %46 : vector<1x256xf32> to vector<4x256xf32>
    %48 = arith.mulf %45, %47 : vector<4x256xf32>
    %49 = vector.extract_strided_slice %35 {offsets = [0, 16], sizes = [4, 256], strides = [1, 1]} : vector<4x290xf32> to vector<4x256xf32>
    %50 = vector.extract_strided_slice %36 {offsets = [3, 0], sizes = [1, 256], strides = [1, 1]} : vector<9x256xf32> to vector<1x256xf32>
    %51 = vector.broadcast %50 : vector<1x256xf32> to vector<4x256xf32>
    %52 = arith.mulf %49, %51 : vector<4x256xf32>
    %53 = vector.extract_strided_slice %35 {offsets = [0, 17], sizes = [4, 256], strides = [1, 1]} : vector<4x290xf32> to vector<4x256xf32>
    %54 = vector.extract_strided_slice %36 {offsets = [4, 0], sizes = [1, 256], strides = [1, 1]} : vector<9x256xf32> to vector<1x256xf32>
    %55 = vector.broadcast %54 : vector<1x256xf32> to vector<4x256xf32>
    %56 = arith.mulf %53, %55 : vector<4x256xf32>
    %57 = vector.extract_strided_slice %35 {offsets = [0, 18], sizes = [4, 256], strides = [1, 1]} : vector<4x290xf32> to vector<4x256xf32>
    %58 = vector.extract_strided_slice %36 {offsets = [5, 0], sizes = [1, 256], strides = [1, 1]} : vector<9x256xf32> to vector<1x256xf32>
    %59 = vector.broadcast %58 : vector<1x256xf32> to vector<4x256xf32>
    %60 = arith.mulf %57, %59 : vector<4x256xf32>
    %61 = vector.extract_strided_slice %35 {offsets = [0, 32], sizes = [4, 256], strides = [1, 1]} : vector<4x290xf32> to vector<4x256xf32>
    %62 = vector.extract_strided_slice %36 {offsets = [6, 0], sizes = [1, 256], strides = [1, 1]} : vector<9x256xf32> to vector<1x256xf32>
    %63 = vector.broadcast %62 : vector<1x256xf32> to vector<4x256xf32>
    %64 = arith.mulf %61, %63 : vector<4x256xf32>
    %65 = vector.extract_strided_slice %35 {offsets = [0, 33], sizes = [4, 256], strides = [1, 1]} : vector<4x290xf32> to vector<4x256xf32>
    %66 = vector.extract_strided_slice %36 {offsets = [7, 0], sizes = [1, 256], strides = [1, 1]} : vector<9x256xf32> to vector<1x256xf32>
    %67 = vector.broadcast %66 : vector<1x256xf32> to vector<4x256xf32>
    %68 = arith.mulf %65, %67 : vector<4x256xf32>
    %69 = vector.extract_strided_slice %35 {offsets = [0, 34], sizes = [4, 256], strides = [1, 1]} : vector<4x290xf32> to vector<4x256xf32>
    %70 = vector.extract_strided_slice %36 {offsets = [8, 0], sizes = [1, 256], strides = [1, 1]} : vector<9x256xf32> to vector<1x256xf32>
    %71 = vector.broadcast %70 : vector<1x256xf32> to vector<4x256xf32>
    %72 = arith.mulf %69, %71 : vector<4x256xf32>
    %73 = tpu.concatenate %40, %44, %48, %52, %56, %60, %64, %68, %72 in 0 : vector<4x256xf32>, vector<4x256xf32>, vector<4x256xf32>, vector<4x256xf32>, vector<4x256xf32>, vector<4x256xf32>, vector<4x256xf32>, vector<4x256xf32>, vector<4x256xf32> -> vector<36x256xf32>
    %74 = arith.truncf %73 : vector<36x256xf32> to vector<36x256xbf16>
    %c0_20 = arith.constant 0 : index
    %c0_21 = arith.constant 0 : index
    %75 = vector.load %arg8[%c0_20, %c0_21] : memref<4x36xbf16, #tpu.memory_space<vmem>>, vector<4x36xbf16>
    %cst_22 = arith.constant dense<0.000000e+00> : vector<4x256xf32>
    %76 = tpu.matmul %75, %74, %cst_22 {dimension_numbers = #tpu.dot_dimension_numbers<[1], [0], [0], [1], [0, 0, 1, 1], [], []>} : vector<4x36xbf16>, vector<36x256xbf16>, vector<4x256xf32> -> vector<4x256xf32>
    %c0_23 = arith.constant 0 : index
    %c0_24 = arith.constant 0 : index
    %77 = vector.load %arg9[%c0_23, %c0_24] : memref<4x1xf32, #tpu.memory_space<vmem>>, vector<4x1xf32>
    %78 = vector.broadcast %77 : vector<4x1xf32> to vector<4x256xf32>
    %79 = arith.mulf %76, %78 : vector<4x256xf32>
    %c0_25 = arith.constant 0 : index
    %c0_26 = arith.constant 0 : index
    %80 = vector.load %arg10[%c0_25, %c0_26] : memref<4x1xf32, #tpu.memory_space<vmem>>, vector<4x1xf32>
    %81 = vector.broadcast %80 : vector<4x1xf32> to vector<4x256xf32>
    %82 = arith.addf %79, %81 : vector<4x256xf32>
    %83 = arith.negf %82 : vector<4x256xf32>
    %84 = math.exp %83 : vector<4x256xf32>
    %cst_27 = arith.constant 1.000000e+00 : f32
    %85 = vector.broadcast %cst_27 : f32 to vector<4x256xf32>
    %86 = arith.addf %85, %84 : vector<4x256xf32>
    %87 = arith.divf %85, %86 : vector<4x256xf32>
    %88 = arith.mulf %82, %87 : vector<4x256xf32>
    %89 = arith.addf %18, %88 : vector<4x256xf32>
    %c0_28 = arith.constant 0 : index
    %c0_29 = arith.constant 0 : index
    %90 = vector.load %arg12[%c0_28, %c0_29] : memref<4x4xbf16, #tpu.memory_space<vmem>>, vector<4x4xbf16>
    %91 = arith.truncf %89 : vector<4x256xf32> to vector<4x256xbf16>
    %cst_30 = arith.constant dense<0.000000e+00> : vector<4x256xf32>
    %92 = tpu.matmul %90, %91, %cst_30 {dimension_numbers = #tpu.dot_dimension_numbers<[1], [0], [0], [1], [0, 0, 1, 1], [], []>} : vector<4x4xbf16>, vector<4x256xbf16>, vector<4x256xf32> -> vector<4x256xf32>
    %93 = tpu.concatenate %92, %5 in 0 : vector<4x256xf32>, vector<4x256xf32> -> vector<8x256xf32>
    %c0_31 = arith.constant 0 : index
    %c0_32 = arith.constant 0 : index
    %94 = vector.load %arg13[%c0_31, %c0_32] : memref<8x1xf32, #tpu.memory_space<vmem>>, vector<8x1xf32>
    %95 = vector.broadcast %94 : vector<8x1xf32> to vector<8x256xf32>
    %96 = arith.mulf %93, %95 : vector<8x256xf32>
    %c0_33 = arith.constant 0 : index
    %c0_34 = arith.constant 0 : index
    %97 = vector.load %arg14[%c0_33, %c0_34] : memref<8x1xf32, #tpu.memory_space<vmem>>, vector<8x1xf32>
    %98 = vector.broadcast %97 : vector<8x1xf32> to vector<8x256xf32>
    %99 = arith.addf %96, %98 : vector<8x256xf32>
    %cst_35 = arith.constant 0.000000e+00 : f32
    %100 = vector.broadcast %cst_35 : f32 to vector<8x256xf32>
    %101 = arith.cmpf oge, %99, %100 : vector<8x256xf32>
    %cst_36 = arith.constant 1.000000e-01 : f32
    %102 = vector.broadcast %cst_36 : f32 to vector<8x256xf32>
    %103 = arith.mulf %102, %99 : vector<8x256xf32>
    %104 = arith.select %101, %99, %103 : vector<8x256xi1>, vector<8x256xf32>
    %c0_37 = arith.constant 0 : index
    %c0_38 = arith.constant 0 : index
    %105 = vector.load %arg15[%c0_37, %c0_38] : memref<8x8xbf16, #tpu.memory_space<vmem>>, vector<8x8xbf16>
    %106 = arith.truncf %104 : vector<8x256xf32> to vector<8x256xbf16>
    %cst_39 = arith.constant dense<0.000000e+00> : vector<8x256xf32>
    %107 = tpu.matmul %105, %106, %cst_39 {dimension_numbers = #tpu.dot_dimension_numbers<[1], [0], [0], [1], [0, 0, 1, 1], [], []>} : vector<8x8xbf16>, vector<8x256xbf16>, vector<8x256xf32> -> vector<8x256xf32>
    %c0_40 = arith.constant 0 : index
    %c0_41 = arith.constant 0 : index
    %108 = vector.load %arg16[%c0_40, %c0_41] : memref<8x1xf32, #tpu.memory_space<vmem>>, vector<8x1xf32>
    %109 = vector.broadcast %108 : vector<8x1xf32> to vector<8x256xf32>
    %110 = arith.mulf %107, %109 : vector<8x256xf32>
    %c0_42 = arith.constant 0 : index
    %c0_43 = arith.constant 0 : index
    %111 = vector.load %arg17[%c0_42, %c0_43] : memref<8x1xf32, #tpu.memory_space<vmem>>, vector<8x1xf32>
    %112 = vector.broadcast %111 : vector<8x1xf32> to vector<8x256xf32>
    %113 = arith.addf %110, %112 : vector<8x256xf32>
    %114 = arith.negf %113 : vector<8x256xf32>
    %115 = math.exp %114 : vector<8x256xf32>
    %cst_44 = arith.constant 1.000000e+00 : f32
    %116 = vector.broadcast %cst_44 : f32 to vector<8x256xf32>
    %117 = arith.addf %116, %115 : vector<8x256xf32>
    %118 = arith.divf %116, %117 : vector<8x256xf32>
    %119 = arith.mulf %113, %118 : vector<8x256xf32>
    %c0_45 = arith.constant 0 : index
    %c0_46 = arith.constant 0 : index
    %c0_47 = arith.constant 0 : index
    %120 = vector.load %arg18[%c0_45, %c0_46, %c0_47] : memref<1x8x256xf32, #tpu.memory_space<vmem>>, vector<1x8x256xf32>
    %121 = vector.shape_cast %120 : vector<1x8x256xf32> to vector<8x256xf32>
    %122 = vector.shape_cast %119 : vector<8x256xf32> to vector<1x8x256xf32>
    tpu.vector_store %arg18[%c0_45, %c0_46, %c0_47], %122 {strides = array<i32>} : memref<1x8x256xf32, #tpu.memory_space<vmem>>, vector<1x8x256xf32>,
    return
  }
  func.func @transform_0(%arg0: i32) -> (i32, i32, i32) {
    %c0_i32 = arith.constant 0 : i32
    %c0_i32_0 = arith.constant 0 : i32
    %c0_i32_1 = arith.constant 0 : i32
    return %arg0, %c0_i32, %c0_i32_0 : i32, i32, i32
  }
  func.func @transform_1(%arg0: i32) -> (i32, i32) {
    %c0_i32 = arith.constant 0 : i32
    %c0_i32_0 = arith.constant 0 : i32
    %c0_i32_1 = arith.constant 0 : i32
    return %c0_i32, %c0_i32_0 : i32, i32
  }
  func.func @transform_2(%arg0: i32) -> (i32, i32) {
    %c0_i32 = arith.constant 0 : i32
    %c0_i32_0 = arith.constant 0 : i32
    %c0_i32_1 = arith.constant 0 : i32
    return %c0_i32, %c0_i32_0 : i32, i32
  }
  func.func @transform_3(%arg0: i32) -> (i32, i32) {
    %c0_i32 = arith.constant 0 : i32
    %c0_i32_0 = arith.constant 0 : i32
    %c0_i32_1 = arith.constant 0 : i32
    return %c0_i32, %c0_i32_0 : i32, i32
  }
  func.func @transform_4(%arg0: i32) -> (i32, i32) {
    %c0_i32 = arith.constant 0 : i32
    %c0_i32_0 = arith.constant 0 : i32
    %c0_i32_1 = arith.constant 0 : i32
    return %c0_i32, %c0_i32_0 : i32, i32
  }
  func.func @transform_5(%arg0: i32) -> (i32, i32) {
    %c0_i32 = arith.constant 0 : i32
    %c0_i32_0 = arith.constant 0 : i32
    %c0_i32_1 = arith.constant 0 : i32
    return %c0_i32, %c0_i32_0 : i32, i32
  }
  func.func @transform_6(%arg0: i32) -> (i32, i32) {
    %c0_i32 = arith.constant 0 : i32
    %c0_i32_0 = arith.constant 0 : i32
    %c0_i32_1 = arith.constant 0 : i32
    return %c0_i32, %c0_i32_0 : i32, i32
  }
  func.func @transform_7(%arg0: i32) -> (i32, i32) {
    %c0_i32 = arith.constant 0 : i32
    %c0_i32_0 = arith.constant 0 : i32
    %c0_i32_1 = arith.constant 0 : i32
    return %c0_i32, %c0_i32_0 : i32, i32
  }
  func.func @transform_8(%arg0: i32) -> (i32, i32) {
    %c0_i32 = arith.constant 0 : i32
    %c0_i32_0 = arith.constant 0 : i32
    %c0_i32_1 = arith.constant 0 : i32
    return %c0_i32, %c0_i32_0 : i32, i32
  }
  func.func @transform_9(%arg0: i32) -> (i32, i32) {
    %c0_i32 = arith.constant 0 : i32
    %c0_i32_0 = arith.constant 0 : i32
    %c0_i32_1 = arith.constant 0 : i32
    return %c0_i32, %c0_i32_0 : i32, i32
  }
  func.func @transform_10(%arg0: i32) -> (i32, i32) {
    %c0_i32 = arith.constant 0 : i32
    %c0_i32_0 = arith.constant 0 : i32
    %c0_i32_1 = arith.constant 0 : i32
    return %c0_i32, %c0_i32_0 : i32, i32
  }
  func.func @transform_11(%arg0: i32) -> (i32, i32) {
    %c0_i32 = arith.constant 0 : i32
    %c0_i32_0 = arith.constant 0 : i32
    %c0_i32_1 = arith.constant 0 : i32
    return %c0_i32, %c0_i32_0 : i32, i32
  }
  func.func @transform_12(%arg0: i32) -> (i32, i32) {
    %c0_i32 = arith.constant 0 : i32
    %c0_i32_0 = arith.constant 0 : i32
    %c0_i32_1 = arith.constant 0 : i32
    return %c0_i32, %c0_i32_0 : i32, i32
  }
  func.func @transform_13(%arg0: i32) -> (i32, i32) {
    %c0_i32 = arith.constant 0 : i32
    %c0_i32_0 = arith.constant 0 : i32
    %c0_i32_1 = arith.constant 0 : i32
    return %c0_i32, %c0_i32_0 : i32, i32
  }
  func.func @transform_14(%arg0: i32) -> (i32, i32) {
    %c0_i32 = arith.constant 0 : i32
    %c0_i32_0 = arith.constant 0 : i32
    %c0_i32_1 = arith.constant 0 : i32
    return %c0_i32, %c0_i32_0 : i32, i32
  }
  func.func @transform_15(%arg0: i32) -> (i32, i32) {
    %c0_i32 = arith.constant 0 : i32
    %c0_i32_0 = arith.constant 0 : i32
    %c0_i32_1 = arith.constant 0 : i32
    return %c0_i32, %c0_i32_0 : i32, i32
  }
  func.func @transform_16(%arg0: i32) -> (i32, i32) {
    %c0_i32 = arith.constant 0 : i32
    %c0_i32_0 = arith.constant 0 : i32
    %c0_i32_1 = arith.constant 0 : i32
    return %c0_i32, %c0_i32_0 : i32, i32
  }
  func.func @transform_17(%arg0: i32) -> (i32, i32, i32) {
    %c0_i32 = arith.constant 0 : i32
    %c0_i32_0 = arith.constant 0 : i32
    %c0_i32_1 = arith.constant 0 : i32
    return %arg0, %c0_i32, %c0_i32_0 : i32, i32, i32
  }
}

</mosaic_0001>

<llo_original>
// kernel: bottleneck_csp_forward.1
$region0: #{bottleneck_csp_forward.1}
  #allocation0 [shape = 'u32[]', space=smem, size = 0x4, offset = 0x4, fixed_abs, tag = 'smem constant byte address 0x4 - core index']
  #allocation1 [shape = 'u32[72,128]{1,0:T(1,128)}', space=vmem, size = 0x9000, scoped, tag = 'internal scratch']
  %s0 = inlined_call_operand.vmem [shape: f32[2,8,256], index: 0, kind: input, shape index: {}]
  %s1 = inlined_call_operand.vmem [shape: bf16[8,8], index: 1, kind: input, shape index: {}]
  %s2 = inlined_call_operand.vmem [shape: f32[4,1], index: 2, kind: input, shape index: {}]
  %s3 = inlined_call_operand.vmem [shape: f32[4,1], index: 3, kind: input, shape index: {}]
  %s4 = inlined_call_operand.vmem [shape: bf16[4,4], index: 4, kind: input, shape index: {}]
  %s5 = inlined_call_operand.vmem [shape: f32[4,1], index: 5, kind: input, shape index: {}]
  %s6 = inlined_call_operand.vmem [shape: f32[4,1], index: 6, kind: input, shape index: {}]
  %s7 = inlined_call_operand.vmem [shape: bf16[4,36], index: 7, kind: input, shape index: {}]
  %s8 = inlined_call_operand.vmem [shape: f32[4,1], index: 8, kind: input, shape index: {}]
  %s9 = inlined_call_operand.vmem [shape: f32[4,1], index: 9, kind: input, shape index: {}]
  %s10 = inlined_call_operand.vmem [shape: f32[9,256], index: 10, kind: input, shape index: {}]
  %s11 = inlined_call_operand.vmem [shape: bf16[4,4], index: 11, kind: input, shape index: {}]
  %s12 = inlined_call_operand.vmem [shape: f32[8,1], index: 12, kind: input, shape index: {}]
  %s13 = inlined_call_operand.vmem [shape: f32[8,1], index: 13, kind: input, shape index: {}]
  %s14 = inlined_call_operand.vmem [shape: bf16[8,8], index: 14, kind: input, shape index: {}]
  %s15 = inlined_call_operand.vmem [shape: f32[8,1], index: 15, kind: input, shape index: {}]
  %s16 = inlined_call_operand.vmem [shape: f32[8,1], index: 16, kind: input, shape index: {}]
  %s17 = inlined_call_operand.vmem [shape: f32[2,8,256], index: 17, kind: output, shape index: {}]
  %s18 = sld [smem:[#allocation0]]
  $region101: #{bottleneck_csp_forward.1} parent=0
    _
  %s20 = ssub.s32 1, %s18
  %s21 = scalar_select 0, %s20, %s18
  loop: start=0, step=1, limit=4
  $region2: #{bottleneck_csp_forward.1} parent=0 // loop_pre_header
    _
  $region3: #{bottleneck_csp_forward.1} parent=0 // loop_header
    %s23 = sphi 0, %s27
    %p24 = scmp.ge.s32.totalorder %s23, 4
    %s33 = sphi 0, %s35
    %s36 = sphi 0, %s33
    %s37 = sphi 0, %s36
    %s53 = sphi 0, %s37
    %s57 = sphi 0, %s57
    %s59 = sphi 0, %s57
    %s60 = sphi 0, %s59
    %s74 = sphi 0, %s60
    %s78 = sphi 0, %s78
    %s80 = sphi 0, %s78
    %s81 = sphi 0, %s80
    %s95 = sphi 0, %s81
    %s99 = sphi 0, %s99
    %s101 = sphi 0, %s99
    %s102 = sphi 0, %s101
    %s116 = sphi 0, %s102
    %s120 = sphi 0, %s120
    %s122 = sphi 0, %s120
    %s123 = sphi 0, %s122
    %s137 = sphi 0, %s123
    %s141 = sphi 0, %s141
    %s143 = sphi 0, %s141
    %s144 = sphi 0, %s143
    %s158 = sphi 0, %s144
    %s162 = sphi 0, %s162
    %s164 = sphi 0, %s162
    %s165 = sphi 0, %s164
    %s179 = sphi 0, %s165
    %s183 = sphi 0, %s183
    %s185 = sphi 0, %s183
    %s186 = sphi 0, %s185
    %s200 = sphi 0, %s186
    %s204 = sphi 0, %s204
    %s206 = sphi 0, %s204
    %s207 = sphi 0, %s206
    %s221 = sphi 0, %s207
    %s225 = sphi 0, %s225
    %s227 = sphi 0, %s225
    %s228 = sphi 0, %s227
    %s242 = sphi 0, %s228
    %s246 = sphi 0, %s246
    %s248 = sphi 0, %s246
    %s249 = sphi 0, %s248
    %s263 = sphi 0, %s249
    %s267 = sphi 0, %s267
    %s269 = sphi 0, %s267
    %s270 = sphi 0, %s269
    %s284 = sphi 0, %s270
    %s288 = sphi 0, %s288
    %s290 = sphi 0, %s288
    %s291 = sphi 0, %s290
    %s305 = sphi 0, %s291
    %s309 = sphi 0, %s309
    %s311 = sphi 0, %s309
    %s312 = sphi 0, %s311
    %s326 = sphi 0, %s312
    %s330 = sphi 0, %s330
    %s332 = sphi 0, %s330
    %s333 = sphi 0, %s332
    %s347 = sphi 0, %s333
    %s351 = sphi 0, %s351
    %s353 = sphi 0, %s351
    %s354 = sphi 0, %s353
    %s368 = sphi 0, %s354
    %s372 = sphi 0, %s372
    %s374 = sphi 0, %s372
    %s375 = sphi 0, %s374
    %s389 = sphi 0, %s375
    %s395 = sphi 0, %s397
    %s398 = sphi 0, %s395
    %s399 = sphi 0, %s398
    %s415 = sphi 0, %s399
  $region4: #{bottleneck_csp_forward.1} parent=0 // loop_header_branch
    %26 = sbr.rel (%p24) target = $region8
  $region5: #{bottleneck_csp_forward.1} parent=0 // loop_body
    %s28 = ssub.s32 %s23, 1
    %s29 = ssub.s32 %s23, 2
    %s30 = sadd.s32 %s23, 1
    %s31 = ssub.s32 %s23, %s30
    %p32 = scmp.eq.s32.totalorder %s31, 0
    %s34 = sadd.s32 %s33, 1
    %s35 = scalar_select %p32, %s33, %s34
    %p38 = pneg %p32
    %p39 = scmp.eq.s32.totalorder %s23, 1
    %p40 = por %p38, %p39
    %p41 = scmp.ne.s32.totalorder %s33, %s36
    %p42 = scmp.eq.s32.totalorder %s23, 0
    %p43 = por %p41, %p42
    %p44 = scmp.ne.s32.totalorder %s33, %s36
    %p45 = scmp.eq.s32.totalorder %s28, 1
    %p46 = por %p44, %p45
    %p47 = scmp.ne.s32.totalorder %s36, %s37
    %p48 = scmp.eq.s32.totalorder %s28, 0
    %p49 = por %p47, %p48
    %p50 = scmp.ne.s32.totalorder %s36, %s37
    %p51 = scmp.eq.s32.totalorder %s29, 1
    %p52 = por %p50, %p51
    %p54 = scmp.ne.s32.totalorder %s37, %s53
    %p55 = scmp.eq.s32.totalorder %s29, 0
    %p56 = por %p54, %p55
    %s58 = sadd.s32 %s57, 1
    %p61 = scmp.eq.s32.totalorder %s23, 1
    %p62 = scmp.ne.s32.totalorder %s57, %s59
    %p63 = scmp.eq.s32.totalorder %s23, 0
    %p64 = por %p62, %p63
    %p65 = scmp.ne.s32.totalorder %s57, %s59
    %p66 = scmp.eq.s32.totalorder %s28, 1
    %p67 = por %p65, %p66
    %p68 = scmp.ne.s32.totalorder %s59, %s60
    %p69 = scmp.eq.s32.totalorder %s28, 0
    %p70 = por %p68, %p69
    %p71 = scmp.ne.s32.totalorder %s59, %s60
    %p72 = scmp.eq.s32.totalorder %s29, 1
    %p73 = por %p71, %p72
    %p75 = scmp.ne.s32.totalorder %s60, %s74
    %p76 = scmp.eq.s32.totalorder %s29, 0
    %p77 = por %p75, %p76
    %s79 = sadd.s32 %s78, 1
    %p82 = scmp.eq.s32.totalorder %s23, 1
    %p83 = scmp.ne.s32.totalorder %s78, %s80
    %p84 = scmp.eq.s32.totalorder %s23, 0
    %p85 = por %p83, %p84
    %p86 = scmp.ne.s32.totalorder %s78, %s80
    %p87 = scmp.eq.s32.totalorder %s28, 1
    %p88 = por %p86, %p87
    %p89 = scmp.ne.s32.totalorder %s80, %s81
    %p90 = scmp.eq.s32.totalorder %s28, 0
    %p91 = por %p89, %p90
    %p92 = scmp.ne.s32.totalorder %s80, %s81
    %p93 = scmp.eq.s32.totalorder %s29, 1
    %p94 = por %p92, %p93
    %p96 = scmp.ne.s32.totalorder %s81, %s95
    %p97 = scmp.eq.s32.totalorder %s29, 0
    %p98 = por %p96, %p97
    %s100 = sadd.s32 %s99, 1
    %p103 = scmp.eq.s32.totalorder %s23, 1
    %p104 = scmp.ne.s32.totalorder %s99, %s101
    %p105 = scmp.eq.s32.totalorder %s23, 0
    %p106 = por %p104, %p105
    %p107 = scmp.ne.s32.totalorder %s99, %s101
    %p108 = scmp.eq.s32.totalorder %s28, 1
    %p109 = por %p107, %p108
    %p110 = scmp.ne.s32.totalorder %s101, %s102
    %p111 = scmp.eq.s32.totalorder %s28, 0
    %p112 = por %p110, %p111
    %p113 = scmp.ne.s32.totalorder %s101, %s102
    %p114 = scmp.eq.s32.totalorder %s29, 1
    %p115 = por %p113, %p114
    %p117 = scmp.ne.s32.totalorder %s102, %s116
    %p118 = scmp.eq.s32.totalorder %s29, 0
    %p119 = por %p117, %p118
    %s121 = sadd.s32 %s120, 1
    %p124 = scmp.eq.s32.totalorder %s23, 1
    %p125 = scmp.ne.s32.totalorder %s120, %s122
    %p126 = scmp.eq.s32.totalorder %s23, 0
    %p127 = por %p125, %p126
    %p128 = scmp.ne.s32.totalorder %s120, %s122
    %p129 = scmp.eq.s32.totalorder %s28, 1
    %p130 = por %p128, %p129
    %p131 = scmp.ne.s32.totalorder %s122, %s123
    %p132 = scmp.eq.s32.totalorder %s28, 0
    %p133 = por %p131, %p132
    %p134 = scmp.ne.s32.totalorder %s122, %s123
    %p135 = scmp.eq.s32.totalorder %s29, 1
    %p136 = por %p134, %p135
    %p138 = scmp.ne.s32.totalorder %s123, %s137
    %p139 = scmp.eq.s32.totalorder %s29, 0
    %p140 = por %p138, %p139
    %s142 = sadd.s32 %s141, 1
    %p145 = scmp.eq.s32.totalorder %s23, 1
    %p146 = scmp.ne.s32.totalorder %s141, %s143
    %p147 = scmp.eq.s32.totalorder %s23, 0
    %p148 = por %p146, %p147
    %p149 = scmp.ne.s32.totalorder %s141, %s143
    %p150 = scmp.eq.s32.totalorder %s28, 1
    %p151 = por %p149, %p150
    %p152 = scmp.ne.s32.totalorder %s143, %s144
    %p153 = scmp.eq.s32.totalorder %s28, 0
    %p154 = por %p152, %p153
    %p155 = scmp.ne.s32.totalorder %s143, %s144
    %p156 = scmp.eq.s32.totalorder %s29, 1
    %p157 = por %p155, %p156
    %p159 = scmp.ne.s32.totalorder %s144, %s158
    %p160 = scmp.eq.s32.totalorder %s29, 0
    %p161 = por %p159, %p160
    %s163 = sadd.s32 %s162, 1
    %p166 = scmp.eq.s32.totalorder %s23, 1
    %p167 = scmp.ne.s32.totalorder %s162, %s164
    %p168 = scmp.eq.s32.totalorder %s23, 0
    %p169 = por %p167, %p168
    %p170 = scmp.ne.s32.totalorder %s162, %s164
    %p171 = scmp.eq.s32.totalorder %s28, 1
    %p172 = por %p170, %p171
    %p173 = scmp.ne.s32.totalorder %s164, %s165
    %p174 = scmp.eq.s32.totalorder %s28, 0
    %p175 = por %p173, %p174
    %p176 = scmp.ne.s32.totalorder %s164, %s165
    %p177 = scmp.eq.s32.totalorder %s29, 1
    %p178 = por %p176, %p177
    %p180 = scmp.ne.s32.totalorder %s165, %s179
    %p181 = scmp.eq.s32.totalorder %s29, 0
    %p182 = por %p180, %p181
    %s184 = sadd.s32 %s183, 1
    %p187 = scmp.eq.s32.totalorder %s23, 1
    %p188 = scmp.ne.s32.totalorder %s183, %s185
    %p189 = scmp.eq.s32.totalorder %s23, 0
    %p190 = por %p188, %p189
    %p191 = scmp.ne.s32.totalorder %s183, %s185
    %p192 = scmp.eq.s32.totalorder %s28, 1
    %p193 = por %p191, %p192
    %p194 = scmp.ne.s32.totalorder %s185, %s186
    %p195 = scmp.eq.s32.totalorder %s28, 0
    %p196 = por %p194, %p195
    %p197 = scmp.ne.s32.totalorder %s185, %s186
    %p198 = scmp.eq.s32.totalorder %s29, 1
    %p199 = por %p197, %p198
    %p201 = scmp.ne.s32.totalorder %s186, %s200
    %p202 = scmp.eq.s32.totalorder %s29, 0
    %p203 = por %p201, %p202
    %s205 = sadd.s32 %s204, 1
    %p208 = scmp.eq.s32.totalorder %s23, 1
    %p209 = scmp.ne.s32.totalorder %s204, %s206
    %p210 = scmp.eq.s32.totalorder %s23, 0
    %p211 = por %p209, %p210
    %p212 = scmp.ne.s32.totalorder %s204, %s206
    %p213 = scmp.eq.s32.totalorder %s28, 1
    %p214 = por %p212, %p213
    %p215 = scmp.ne.s32.totalorder %s206, %s207
    %p216 = scmp.eq.s32.totalorder %s28, 0
    %p217 = por %p215, %p216
    %p218 = scmp.ne.s32.totalorder %s206, %s207
    %p219 = scmp.eq.s32.totalorder %s29, 1
    %p220 = por %p218, %p219
    %p222 = scmp.ne.s32.totalorder %s207, %s221
    %p223 = scmp.eq.s32.totalorder %s29, 0
    %p224 = por %p222, %p223
    %s226 = sadd.s32 %s225, 1
    %p229 = scmp.eq.s32.totalorder %s23, 1
    %p230 = scmp.ne.s32.totalorder %s225, %s227
    %p231 = scmp.eq.s32.totalorder %s23, 0
    %p232 = por %p230, %p231
    %p233 = scmp.ne.s32.totalorder %s225, %s227
    %p234 = scmp.eq.s32.totalorder %s28, 1
    %p235 = por %p233, %p234
    %p236 = scmp.ne.s32.totalorder %s227, %s228
    %p237 = scmp.eq.s32.totalorder %s28, 0
    %p238 = por %p236, %p237
    %p239 = scmp.ne.s32.totalorder %s227, %s228
    %p240 = scmp.eq.s32.totalorder %s29, 1
    %p241 = por %p239, %p240
    %p243 = scmp.ne.s32.totalorder %s228, %s242
    %p244 = scmp.eq.s32.totalorder %s29, 0
    %p245 = por %p243, %p244
    %s247 = sadd.s32 %s246, 1
    %p250 = scmp.eq.s32.totalorder %s23, 1
    %p251 = scmp.ne.s32.totalorder %s246, %s248
    %p252 = scmp.eq.s32.totalorder %s23, 0
    %p253 = por %p251, %p252
    %p254 = scmp.ne.s32.totalorder %s246, %s248
    %p255 = scmp.eq.s32.totalorder %s28, 1
    %p256 = por %p254, %p255
    %p257 = scmp.ne.s32.totalorder %s248, %s249
    %p258 = scmp.eq.s32.totalorder %s28, 0
    %p259 = por %p257, %p258
    %p260 = scmp.ne.s32.totalorder %s248, %s249
    %p261 = scmp.eq.s32.totalorder %s29, 1
    %p262 = por %p260, %p261
    %p264 = scmp.ne.s32.totalorder %s249, %s263
    %p265 = scmp.eq.s32.totalorder %s29, 0
    %p266 = por %p264, %p265
    %s268 = sadd.s32 %s267, 1
    %p271 = scmp.eq.s32.totalorder %s23, 1
    %p272 = scmp.ne.s32.totalorder %s267, %s269
    %p273 = scmp.eq.s32.totalorder %s23, 0
    %p274 = por %p272, %p273
    %p275 = scmp.ne.s32.totalorder %s267, %s269
    %p276 = scmp.eq.s32.totalorder %s28, 1
    %p277 = por %p275, %p276
    %p278 = scmp.ne.s32.totalorder %s269, %s270
    %p279 = scmp.eq.s32.totalorder %s28, 0
    %p280 = por %p278, %p279
    %p281 = scmp.ne.s32.totalorder %s269, %s270
    %p282 = scmp.eq.s32.totalorder %s29, 1
    %p283 = por %p281, %p282
    %p285 = scmp.ne.s32.totalorder %s270, %s284
    %p286 = scmp.eq.s32.totalorder %s29, 0
    %p287 = por %p285, %p286
    %s289 = sadd.s32 %s288, 1
    %p292 = scmp.eq.s32.totalorder %s23, 1
    %p293 = scmp.ne.s32.totalorder %s288, %s290
    %p294 = scmp.eq.s32.totalorder %s23, 0
    %p295 = por %p293, %p294
    %p296 = scmp.ne.s32.totalorder %s288, %s290
    %p297 = scmp.eq.s32.totalorder %s28, 1
    %p298 = por %p296, %p297
    %p299 = scmp.ne.s32.totalorder %s290, %s291
    %p300 = scmp.eq.s32.totalorder %s28, 0
    %p301 = por %p299, %p300
    %p302 = scmp.ne.s32.totalorder %s290, %s291
    %p303 = scmp.eq.s32.totalorder %s29, 1
    %p304 = por %p302, %p303
    %p306 = scmp.ne.s32.totalorder %s291, %s305
    %p307 = scmp.eq.s32.totalorder %s29, 0
    %p308 = por %p306, %p307
    %s310 = sadd.s32 %s309, 1
    %p313 = scmp.eq.s32.totalorder %s23, 1
    %p314 = scmp.ne.s32.totalorder %s309, %s311
    %p315 = scmp.eq.s32.totalorder %s23, 0
    %p316 = por %p314, %p315
    %p317 = scmp.ne.s32.totalorder %s309, %s311
    %p318 = scmp.eq.s32.totalorder %s28, 1
    %p319 = por %p317, %p318
    %p320 = scmp.ne.s32.totalorder %s311, %s312
    %p321 = scmp.eq.s32.totalorder %s28, 0
    %p322 = por %p320, %p321
    %p323 = scmp.ne.s32.totalorder %s311, %s312
    %p324 = scmp.eq.s32.totalorder %s29, 1
    %p325 = por %p323, %p324
    %p327 = scmp.ne.s32.totalorder %s312, %s326
    %p328 = scmp.eq.s32.totalorder %s29, 0
    %p329 = por %p327, %p328
    %s331 = sadd.s32 %s330, 1
    %p334 = scmp.eq.s32.totalorder %s23, 1
    %p335 = scmp.ne.s32.totalorder %s330, %s332
    %p336 = scmp.eq.s32.totalorder %s23, 0
    %p337 = por %p335, %p336
    %p338 = scmp.ne.s32.totalorder %s330, %s332
    %p339 = scmp.eq.s32.totalorder %s28, 1
    %p340 = por %p338, %p339
    %p341 = scmp.ne.s32.totalorder %s332, %s333
    %p342 = scmp.eq.s32.totalorder %s28, 0
    %p343 = por %p341, %p342
    %p344 = scmp.ne.s32.totalorder %s332, %s333
    %p345 = scmp.eq.s32.totalorder %s29, 1
    %p346 = por %p344, %p345
    %p348 = scmp.ne.s32.totalorder %s333, %s347
    %p349 = scmp.eq.s32.totalorder %s29, 0
    %p350 = por %p348, %p349
    %s352 = sadd.s32 %s351, 1
    %p355 = scmp.eq.s32.totalorder %s23, 1
    %p356 = scmp.ne.s32.totalorder %s351, %s353
    %p357 = scmp.eq.s32.totalorder %s23, 0
    %p358 = por %p356, %p357
    %p359 = scmp.ne.s32.totalorder %s351, %s353
    %p360 = scmp.eq.s32.totalorder %s28, 1
    %p361 = por %p359, %p360
    %p362 = scmp.ne.s32.totalorder %s353, %s354
    %p363 = scmp.eq.s32.totalorder %s28, 0
    %p364 = por %p362, %p363
    %p365 = scmp.ne.s32.totalorder %s353, %s354
    %p366 = scmp.eq.s32.totalorder %s29, 1
    %p367 = por %p365, %p366
    %p369 = scmp.ne.s32.totalorder %s354, %s368
    %p370 = scmp.eq.s32.totalorder %s29, 0
    %p371 = por %p369, %p370
    %s373 = sadd.s32 %s372, 1
    %p376 = scmp.eq.s32.totalorder %s23, 1
    %p377 = scmp.ne.s32.totalorder %s372, %s374
    %p378 = scmp.eq.s32.totalorder %s23, 0
    %p379 = por %p377, %p378
    %p380 = scmp.ne.s32.totalorder %s372, %s374
    %p381 = scmp.eq.s32.totalorder %s28, 1
    %p382 = por %p380, %p381
    %p383 = scmp.ne.s32.totalorder %s374, %s375
    %p384 = scmp.eq.s32.totalorder %s28, 0
    %p385 = por %p383, %p384
    %p386 = scmp.ne.s32.totalorder %s374, %s375
    %p387 = scmp.eq.s32.totalorder %s29, 1
    %p388 = por %p386, %p387
    %p390 = scmp.ne.s32.totalorder %s375, %s389
    %p391 = scmp.eq.s32.totalorder %s29, 0
    %p392 = por %p390, %p391
    %s393 = ssub.s32 %s23, %s30
    %p394 = scmp.eq.s32.totalorder %s393, 0
    %s396 = sadd.s32 %s395, 1
    %s397 = scalar_select %p394, %s395, %s396
    %p400 = pneg %p394
    %p401 = scmp.eq.s32.totalorder %s23, 1
    %p402 = por %p400, %p401
    %p403 = scmp.ne.s32.totalorder %s395, %s398
    %p404 = scmp.eq.s32.totalorder %s23, 0
    %p405 = por %p403, %p404
    %p406 = scmp.ne.s32.totalorder %s395, %s398
    %p407 = scmp.eq.s32.totalorder %s28, 1
    %p408 = por %p406, %p407
    %p409 = scmp.ne.s32.totalorder %s398, %s399
    %p410 = scmp.eq.s32.totalorder %s28, 0
    %p411 = por %p409, %p410
    %p412 = scmp.ne.s32.totalorder %s398, %s399
    %p413 = scmp.eq.s32.totalorder %s29, 1
    %p414 = por %p412, %p413
    %p416 = scmp.ne.s32.totalorder %s399, %s415
    %p417 = scmp.eq.s32.totalorder %s29, 0
    %p418 = por %p416, %p417
    %p419 = scmp.le.s32.totalorder 1, %s23
    %p420 = scmp.lt.s32.totalorder %s23, 3
    %p421 = pnand %p419, %p420
    %p422 = pneg %p421
    // Predicated region
    $region9: #{bottleneck_csp_forward.1} parent=5 // pred_check
      _
    $region10: #{bottleneck_csp_forward.1} parent=5 // pred_check_branch
      %424 = sbr.rel (%p421) target = $region12
    $region11: #{bottleneck_csp_forward.1} parent=5 // pred_region
      %s425 = ssub.s32 %s23, 1
      // Predicated region
      $region13: #{bottleneck_csp_forward.1} parent=11 // pred_check
        %p426 = pneg %p70
      $region14: #{bottleneck_csp_forward.1} parent=11 // pred_check_branch
        %428 = sbr.rel (%p426) target = $region16
      $region15: #{bottleneck_csp_forward.1} parent=11 // pred_region
        _
      $region16: #{bottleneck_csp_forward.1} parent=11 // pred_fallthru
        _
      // Predicated region
      $region17: #{bottleneck_csp_forward.1} parent=11 // pred_check
        %p429 = pneg %p91
      $region18: #{bottleneck_csp_forward.1} parent=11 // pred_check_branch
        %431 = sbr.rel (%p429) target = $region20
      $region19: #{bottleneck_csp_forward.1} parent=11 // pred_region
        _
      $region20: #{bottleneck_csp_forward.1} parent=11 // pred_fallthru
        _
      // Predicated region
      $region21: #{bottleneck_csp_forward.1} parent=11 // pred_check
        %p432 = pneg %p112
      $region22: #{bottleneck_csp_forward.1} parent=11 // pred_check_branch
        %434 = sbr.rel (%p432) target = $region24
      $region23: #{bottleneck_csp_forward.1} parent=11 // pred_region
        _
      $region24: #{bottleneck_csp_forward.1} parent=11 // pred_fallthru
        _
      // Predicated region
      $region25: #{bottleneck_csp_forward.1} parent=11 // pred_check
        %p435 = pneg %p133
      $region26: #{bottleneck_csp_forward.1} parent=11 // pred_check_branch
        %437 = sbr.rel (%p435) target = $region28
      $region27: #{bottleneck_csp_forward.1} parent=11 // pred_region
        _
      $region28: #{bottleneck_csp_forward.1} parent=11 // pred_fallthru
        _
      // Predicated region
      $region29: #{bottleneck_csp_forward.1} parent=11 // pred_check
        %p438 = pneg %p154
      $region30: #{bottleneck_csp_forward.1} parent=11 // pred_check_branch
        %440 = sbr.rel (%p438) target = $region32
      $region31: #{bottleneck_csp_forward.1} parent=11 // pred_region
        _
      $region32: #{bottleneck_csp_forward.1} parent=11 // pred_fallthru
        _
      // Predicated region
      $region33: #{bottleneck_csp_forward.1} parent=11 // pred_check
        %p441 = pneg %p175
      $region34: #{bottleneck_csp_forward.1} parent=11 // pred_check_branch
        %443 = sbr.rel (%p441) target = $region36
      $region35: #{bottleneck_csp_forward.1} parent=11 // pred_region
        _
      $region36: #{bottleneck_csp_forward.1} parent=11 // pred_fallthru
        _
      // Predicated region
      $region37: #{bottleneck_csp_forward.1} parent=11 // pred_check
        %p444 = pneg %p196
      $region38: #{bottleneck_csp_forward.1} parent=11 // pred_check_branch
        %446 = sbr.rel (%p444) target = $region40
      $region39: #{bottleneck_csp_forward.1} parent=11 // pred_region
        _
      $region40: #{bottleneck_csp_forward.1} parent=11 // pred_fallthru
        _
      // Predicated region
      $region41: #{bottleneck_csp_forward.1} parent=11 // pred_check
        %p447 = pneg %p217
      $region42: #{bottleneck_csp_forward.1} parent=11 // pred_check_branch
        %449 = sbr.rel (%p447) target = $region44
      $region43: #{bottleneck_csp_forward.1} parent=11 // pred_region
        _
      $region44: #{bottleneck_csp_forward.1} parent=11 // pred_fallthru
        _
      // Predicated region
      $region45: #{bottleneck_csp_forward.1} parent=11 // pred_check
        %p450 = pneg %p238
      $region46: #{bottleneck_csp_forward.1} parent=11 // pred_check_branch
        %452 = sbr.rel (%p450) target = $region48
      $region47: #{bottleneck_csp_forward.1} parent=11 // pred_region
        _
      $region48: #{bottleneck_csp_forward.1} parent=11 // pred_fallthru
        _
      // Predicated region
      $region49: #{bottleneck_csp_forward.1} parent=11 // pred_check
        %p453 = pneg %p259
      $region50: #{bottleneck_csp_forward.1} parent=11 // pred_check_branch
        %455 = sbr.rel (%p453) target = $region52
      $region51: #{bottleneck_csp_forward.1} parent=11 // pred_region
        _
      $region52: #{bottleneck_csp_forward.1} parent=11 // pred_fallthru
        _
      // Predicated region
      $region53: #{bottleneck_csp_forward.1} parent=11 // pred_check
        %p456 = pneg %p280
      $region54: #{bottleneck_csp_forward.1} parent=11 // pred_check_branch
        %458 = sbr.rel (%p456) target = $region56
      $region55: #{bottleneck_csp_forward.1} parent=11 // pred_region
        _
      $region56: #{bottleneck_csp_forward.1} parent=11 // pred_fallthru
        _
      // Predicated region
      $region57: #{bottleneck_csp_forward.1} parent=11 // pred_check
        %p459 = pneg %p301
      $region58: #{bottleneck_csp_forward.1} parent=11 // pred_check_branch
        %461 = sbr.rel (%p459) target = $region60
      $region59: #{bottleneck_csp_forward.1} parent=11 // pred_region
        _
      $region60: #{bottleneck_csp_forward.1} parent=11 // pred_fallthru
        _
      // Predicated region
      $region61: #{bottleneck_csp_forward.1} parent=11 // pred_check
        %p462 = pneg %p322
      $region62: #{bottleneck_csp_forward.1} parent=11 // pred_check_branch
        %464 = sbr.rel (%p462) target = $region64
      $region63: #{bottleneck_csp_forward.1} parent=11 // pred_region
        _
      $region64: #{bottleneck_csp_forward.1} parent=11 // pred_fallthru
        _
      // Predicated region
      $region65: #{bottleneck_csp_forward.1} parent=11 // pred_check
        %p465 = pneg %p343
      $region66: #{bottleneck_csp_forward.1} parent=11 // pred_check_branch
        %467 = sbr.rel (%p465) target = $region68
      $region67: #{bottleneck_csp_forward.1} parent=11 // pred_region
        _
      $region68: #{bottleneck_csp_forward.1} parent=11 // pred_fallthru
        _
      // Predicated region
      $region69: #{bottleneck_csp_forward.1} parent=11 // pred_check
        %p468 = pneg %p364
      $region70: #{bottleneck_csp_forward.1} parent=11 // pred_check_branch
        %470 = sbr.rel (%p468) target = $region72
      $region71: #{bottleneck_csp_forward.1} parent=11 // pred_region
        _
      $region72: #{bottleneck_csp_forward.1} parent=11 // pred_fallthru
        _
      // Predicated region
      $region73: #{bottleneck_csp_forward.1} parent=11 // pred_check
        %p471 = pneg %p385
      $region74: #{bottleneck_csp_forward.1} parent=11 // pred_check_branch
        %473 = sbr.rel (%p471) target = $region76
      $region75: #{bottleneck_csp_forward.1} parent=11 // pred_region
        _
      $region76: #{bottleneck_csp_forward.1} parent=11 // pred_fallthru
        _
    $region12: #{bottleneck_csp_forward.1} parent=5 // pred_fallthru
      _
    %p474 = scmp.lt.s32.totalorder %s23, 2
    // Predicated region
    $region77: #{bottleneck_csp_forward.1} parent=5 // pred_check
      %p475 = pneg %p474
    $region78: #{bottleneck_csp_forward.1} parent=5 // pred_check_branch
      %477 = sbr.rel (%p475) target = $region80
    $region79: #{bottleneck_csp_forward.1} parent=5 // pred_region
      // Predicated region
      $region81: #{bottleneck_csp_forward.1} parent=79 // pred_check
        %p478 = pneg %p43
      $region82: #{bottleneck_csp_forward.1} parent=79 // pred_check_branch
        %480 = sbr.rel (%p478) target = $region84
      $region83: #{bottleneck_csp_forward.1} parent=79 // pred_region
        %p481 = scmp.lt.s32.totalorder %s23, 1
        %s482 = scalar_select %p481, %s23, 1
        %s483 = smul.addr %s482, 2
        %s484 = smul.addr %s483, 8
        %s485 = scalar_lea.vmem %s0, %s484
      $region84: #{bottleneck_csp_forward.1} parent=79 // pred_fallthru
        _
    $region80: #{bottleneck_csp_forward.1} parent=5 // pred_fallthru
      _
    %p486 = scmp.le.s32.totalorder 1, %s23
    %p487 = scmp.lt.s32.totalorder %s23, 3
    %p488 = pnand %p486, %p487
    %p489 = pneg %p488
    // Predicated region
    $region85: #{bottleneck_csp_forward.1} parent=5 // pred_check
      _
    $region86: #{bottleneck_csp_forward.1} parent=5 // pred_check_branch
      %491 = sbr.rel (%p488) target = $region88
    $region87: #{bottleneck_csp_forward.1} parent=5 // pred_region
      %s492 = ssub.s32 %s23, 1
      %p493 = scmp.lt.s32.totalorder %s28, 1
      %s494 = scalar_select %p493, %s28, 1
      %s495 = smul.addr %s494, 2
      %s496 = smul.addr %s495, 8
      %s497 = scalar_lea.vmem %s0, %s496
      %p498 = pneg %p49
      %p499 = pneg %p46
      %p500 = pneg %p70
      %p501 = pneg %p67
      %p502 = pneg %p91
      %p503 = pneg %p88
      %p504 = pneg %p112
      %p505 = pneg %p109
      %p506 = pneg %p133
      %p507 = pneg %p130
      %p508 = pneg %p154
      %p509 = pneg %p151
      %p510 = pneg %p175
      %p511 = pneg %p172
      %p512 = pneg %p196
      %p513 = pneg %p193
      %p514 = pneg %p217
      %p515 = pneg %p214
      %p516 = pneg %p238
      %p517 = pneg %p235
      %p518 = pneg %p259
      %p519 = pneg %p256
      %p520 = pneg %p280
      %p521 = pneg %p277
      %p522 = pneg %p301
      %p523 = pneg %p298
      %p524 = pneg %p322
      %p525 = pneg %p319
      %p526 = pneg %p343
      %p527 = pneg %p340
      %p528 = pneg %p364
      %p529 = pneg %p361
      %p530 = pneg %p385
      %p531 = pneg %p382
      %p532 = pneg %p411
      %p533 = pneg %p408
      %p534 = scmp.lt.s32.totalorder %s28, 1
      %s535 = scalar_select %p534, %s28, 1
      %s536 = smul.addr %s535, 2
      %s537 = smul.addr %s536, 8
      %s538 = scalar_lea.vmem %s17, %s537
      %p539 = scmp.lt.s32.totalorder %s28, 1
      %s540 = scalar_select %p539, %s28, 1
      %s541 = smul.addr %s540, 2
      %s542 = smul.addr %s541, 8
      %s543 = scalar_lea.vmem %s0, %s542
      %p544 = scmp.lt.s32.totalorder %s28, 1
      %s545 = scalar_select %p544, %s28, 1
      %s546 = smul.addr %s545, 2
      %s547 = smul.addr %s546, 8
      %s548 = scalar_lea.vmem %s17, %s547
      %v550 = vld [vmem:[%s543] sm:$0xff]
      %v551 = vld [vmem:[%s543 + $0x8] sm:$0xff]
      %v552 = vpack.c.bf16 %v550, %v550
      %v553 = vpack.c.bf16 %v551, %v551
      %v554 = vld [vmem:[%s1] sm:$0xf]
      %vm555 = vcmask 64512
      %v557 = vsel %vm555, %v554, 0
      %vm559 = vcmask 1043456
      %v561 = vsel %vm559, %v552, 0
      %v564 = vsel %vm559, %v553, 0
      %566 = vmatpush.bf16.msra.mxu0 0
      %567 = vmatpush.bf16.msra.mxu0 0
      %568 = vmatpush.bf16.msra.mxu0 0
      %569 = vmatpush.bf16.msra.mxu0 0
      %570 = vmatpush.bf16.msra.mxu0 0
      %571 = vmatpush.bf16.msra.mxu0 0
      %572 = vmatpush.bf16.msra.mxu0 0
      %573 = vmatpush.bf16.msra.mxu0 %v561
      %574 = vmatmul.bf16.gmra.mxu0 %v557
      %v575 = vpop.f32.mrf.mxu0
      %v576 = vadd.f32 0.0, %v575
      %v577 = vpop.f32.mrf.mxu0
      %578 = vdwg.mxu0
      %579 = vmatpush.bf16.msra.mxu0 0
      %580 = vmatpush.bf16.msra.mxu0 0
      %581 = vmatpush.bf16.msra.mxu0 0
      %582 = vmatpush.bf16.msra.mxu0 0
      %583 = vmatpush.bf16.msra.mxu0 0
      %584 = vmatpush.bf16.msra.mxu0 0
      %585 = vmatpush.bf16.msra.mxu0 0
      %586 = vmatpush.bf16.msra.mxu0 %v564
      %587 = vmatmul.bf16.gmra.mxu0 %v557
      %v588 = vpop.f32.mrf.mxu0
      %v589 = vadd.f32 0.0, %v588
      %v590 = vpop.f32.mrf.mxu0
      %591 = vdwg.mxu0
      %v592 = vld [vmem:[%s2] sm:$0xf]
      %594 = vset.pattern.permute.xlu0 0
      %595 = vperm.xlu0 %594, %v592
      %v596 = vpop.permute.xlu0 %595
      %v598 = vmul.f32 %v576, %v596
      %v599 = vmul.f32 %v589, %v596
      %v600 = vld [vmem:[%s3] sm:$0xf]
      %602 = vset.pattern.permute.xlu0 0
      %603 = vperm.xlu0 %602, %v600
      %v604 = vpop.permute.xlu0 %603
      %v606 = vadd.f32 %v598, %v604
      %v607 = vadd.f32 %v599, %v604
      %v608 = vxor.u32 %v606, 2147483648
      %v609 = vxor.u32 %v607, 2147483648
      %v610 = vmul.f32 %v608, 1.442695
      %v611 = vpow.pop %v610
      %v612 = vmul.f32 %v609, 1.442695
      %v613 = vpow.pop %v612
      %v614 = vadd.f32 %v611, 1.0
      %v615 = vadd.f32 %v613, 1.0
      %v616 = vrcp.pop %v614
      %v617 = vmul.f32 %v614, %v616
      %v618 = vsub.f32 1.0, %v617
      %v619 = vmul.f32 %v616, %v618
      %v620 = vadd.f32 %v616, %v619
      %vm621 = vweird.f32 %v614
      %vm622 = vweird.f32 %v616
      %vm623 = vmor %vm621, %vm622
      %v624 = vsel %vm623, %v616, %v620
      %v625 = vand.u32 2147483647, %v614
      %vm626 = vcmp.eq.f32.partialorder %v625, 8.507059e+37
      %v627 = vand.u32 %v614, 2147483648
      %v628 = vor.u32 1.1754944e-38, %v627
      %v629 = vsel %vm626, %v628, %v624
      %v630 = vmul.f32 1.0, %v629
      %v631 = vrcp.pop %v615
      %v632 = vmul.f32 %v615, %v631
      %v633 = vsub.f32 1.0, %v632
      %v634 = vmul.f32 %v631, %v633
      %v635 = vadd.f32 %v631, %v634
      %vm636 = vweird.f32 %v615
      %vm637 = vweird.f32 %v631
      %vm638 = vmor %vm636, %vm637
      %v639 = vsel %vm638, %v631, %v635
      %v640 = vand.u32 2147483647, %v615
      %vm641 = vcmp.eq.f32.partialorder %v640, 8.507059e+37
      %v642 = vand.u32 %v615, 2147483648
      %v643 = vor.u32 1.1754944e-38, %v642
      %v644 = vsel %vm641, %v643, %v639
      %v645 = vmul.f32 1.0, %v644
      %v646 = vmul.f32 %v606, %v630
      %v647 = vmul.f32 %v607, %v645
      %v648 = vld [vmem:[%s4] sm:$0x3]
      %v649 = vpack.c.bf16 %v646, %v646
      %v650 = vpack.c.bf16 %v647, %v647
      %vm651 = vcmask 31744
      %v653 = vsel %vm651, %v648, 0
      %vm655 = vcmask 1041408
      %v657 = vsel %vm655, %v649, 0
      %v660 = vsel %vm655, %v650, 0
      %662 = vmatpush.bf16.msra.mxu0 0
      %663 = vmatpush.bf16.msra.mxu0 0
      %664 = vmatpush.bf16.msra.mxu0 0
      %665 = vmatpush.bf16.msra.mxu0 0
      %666 = vmatpush.bf16.msra.mxu0 0
      %667 = vmatpush.bf16.msra.mxu0 0
      %668 = vmatpush.bf16.msra.mxu0 0
      %669 = vmatpush.bf16.msra.mxu0 %v657
      %670 = vmatmul.bf16.gmra.mxu0 %v653
      %v671 = vpop.f32.mrf.mxu0
      %v672 = vadd.f32 0.0, %v671
      %v673 = vpop.f32.mrf.mxu0
      %674 = vdwg.mxu0
      %675 = vmatpush.bf16.msra.mxu0 0
      %676 = vmatpush.bf16.msra.mxu0 0
      %677 = vmatpush.bf16.msra.mxu0 0
      %678 = vmatpush.bf16.msra.mxu0 0
      %679 = vmatpush.bf16.msra.mxu0 0
      %680 = vmatpush.bf16.msra.mxu0 0
      %681 = vmatpush.bf16.msra.mxu0 0
      %682 = vmatpush.bf16.msra.mxu0 %v660
      %683 = vmatmul.bf16.gmra.mxu0 %v653
      %v684 = vpop.f32.mrf.mxu0
      %v685 = vadd.f32 0.0, %v684
      %v686 = vpop.f32.mrf.mxu0
      %687 = vdwg.mxu0
      %v688 = vld [vmem:[%s5] sm:$0xf]
      %690 = vset.pattern.permute.xlu0 0
      %691 = vperm.xlu0 %690, %v688
      %v692 = vpop.permute.xlu0 %691
      %v694 = vmul.f32 %v672, %v692
      %v695 = vmul.f32 %v685, %v692
      %v696 = vld [vmem:[%s6] sm:$0xf]
      %698 = vset.pattern.permute.xlu0 0
      %699 = vperm.xlu0 %698, %v696
      %v700 = vpop.permute.xlu0 %699
      %v702 = vadd.f32 %v694, %v700
      %v703 = vadd.f32 %v695, %v700
      %v704 = vxor.u32 %v702, 2147483648
      %v705 = vxor.u32 %v703, 2147483648
      %v706 = vmul.f32 %v704, 1.442695
      %v707 = vpow.pop %v706
      %v708 = vmul.f32 %v705, 1.442695
      %v709 = vpow.pop %v708
      %v710 = vadd.f32 %v707, 1.0
      %v711 = vadd.f32 %v709, 1.0
      %v712 = vrcp.pop %v710
      %v713 = vmul.f32 %v710, %v712
      %v714 = vsub.f32 1.0, %v713
      %v715 = vmul.f32 %v712, %v714
      %v716 = vadd.f32 %v712, %v715
      %vm717 = vweird.f32 %v710
      %vm718 = vweird.f32 %v712
      %vm719 = vmor %vm717, %vm718
      %v720 = vsel %vm719, %v712, %v716
      %v721 = vand.u32 2147483647, %v710
      %vm722 = vcmp.eq.f32.partialorder %v721, 8.507059e+37
      %v723 = vand.u32 %v710, 2147483648
      %v724 = vor.u32 1.1754944e-38, %v723
      %v725 = vsel %vm722, %v724, %v720
      %v726 = vmul.f32 1.0, %v725
      %v727 = vrcp.pop %v711
      %v728 = vmul.f32 %v711, %v727
      %v729 = vsub.f32 1.0, %v728
      %v730 = vmul.f32 %v727, %v729
      %v731 = vadd.f32 %v727, %v730
      %vm732 = vweird.f32 %v711
      %vm733 = vweird.f32 %v727
      %vm734 = vmor %vm732, %vm733
      %v735 = vsel %vm734, %v727, %v731
      %v736 = vand.u32 2147483647, %v711
      %vm737 = vcmp.eq.f32.partialorder %v736, 8.507059e+37
      %v738 = vand.u32 %v711, 2147483648
      %v739 = vor.u32 1.1754944e-38, %v738
      %v740 = vsel %vm737, %v739, %v735
      %v741 = vmul.f32 1.0, %v740
      %v742 = vmul.f32 %v702, %v726
      %v743 = vmul.f32 %v703, %v741
      %746 = vrot.lane.b32.xlu0 %v742, 17
      %v747 = vpop.permute.xlu0 %746
      %748 = vrot.lane.b32.xlu0 %v743, 17
      %v749 = vpop.permute.xlu0 %748
      %vm750 = vcmask 138240
      %v751 = vsel %vm750, %v747, %v749
      %v755 = vsel %vm750, 0.0, %v747
      %v756 = vsel %vm750, %v749, 0.0
      %v757 = vld [vmem:[%s10] sm:$0xff]
      %v758 = vld [vmem:[%s10 + $0x8] sm:$0xff]
      %v759 = vld [vmem:[%s10 + $0x10] sm:$0x1]
      %v760 = vld [vmem:[%s10 + $0x18] sm:$0x1]
      %v761 = vperm.slane %v757, 0
      %v762 = vperm.slane %v758, 0
      %v763 = vmul.f32 %v755, %v761
      %v764 = vmul.f32 %v751, %v762
      %v765 = vperm.slane %v757, 1
      %v766 = vperm.slane %v758, 1
      %769 = vrot.lane.b32.xlu0 %v765, 1
      %v770 = vpop.permute.xlu0 %769
      %771 = vrot.lane.b32.xlu0 %v766, 1
      %v772 = vpop.permute.xlu0 %771
      %vm773 = vcmask 7168
      %v774 = vsel %vm773, %v770, %v772
      %v778 = vmul.f32 %v755, %v770
      %v779 = vmul.f32 %v751, %v774
      %v780 = vmul.f32 %v756, %v772
      %v781 = vperm.slane %v757, 2
      %v782 = vperm.slane %v758, 2
      %785 = vrot.lane.b32.xlu0 %v781, 2
      %v786 = vpop.permute.xlu0 %785
      %787 = vrot.lane.b32.xlu0 %v782, 2
      %v788 = vpop.permute.xlu0 %787
      %vm789 = vcmask 15360
      %v790 = vsel %vm789, %v786, %v788
      %v794 = vmul.f32 %v755, %v786
      %v795 = vmul.f32 %v751, %v790
      %v796 = vmul.f32 %v756, %v788
      %v797 = vperm.slane %v757, 3
      %v798 = vperm.slane %v758, 3
      %801 = vrot.lane.b32.xlu0 %v797, 16
      %v802 = vpop.permute.xlu0 %801
      %803 = vrot.lane.b32.xlu0 %v798, 16
      %v804 = vpop.permute.xlu0 %803
      %vm805 = vcmask 130048
      %v806 = vsel %vm805, %v802, %v804
      %v810 = vmul.f32 %v755, %v802
      %v811 = vmul.f32 %v751, %v806
      %v812 = vmul.f32 %v756, %v804
      %v813 = vperm.slane %v757, 4
      %v814 = vperm.slane %v758, 4
      %817 = vrot.lane.b32.xlu0 %v813, 17
      %v818 = vpop.permute.xlu0 %817
      %819 = vrot.lane.b32.xlu0 %v814, 17
      %v820 = vpop.permute.xlu0 %819
      %v821 = vsel %vm750, %v818, %v820
      %v825 = vmul.f32 %v755, %v818
      %v826 = vmul.f32 %v751, %v821
      %v827 = vmul.f32 %v756, %v820
      %v828 = vperm.slane %v757, 5
      %v829 = vperm.slane %v758, 5
      %832 = vrot.lane.b32.xlu0 %v828, 18
      %v833 = vpop.permute.xlu0 %832
      %834 = vrot.lane.b32.xlu0 %v829, 18
      %v835 = vpop.permute.xlu0 %834
      %vm836 = vcmask 146432
      %v837 = vsel %vm836, %v833, %v835
      %v841 = vmul.f32 %v755, %v833
      %v842 = vmul.f32 %v751, %v837
      %v843 = vmul.f32 %v756, %v835
      %v844 = vperm.slane %v757, 6
      %v845 = vperm.slane %v758, 6
      %848 = vrot.lane.b32.xlu0 %v844, 32
      %v849 = vpop.permute.xlu0 %848
      %850 = vrot.lane.b32.xlu0 %v845, 32
      %v851 = vpop.permute.xlu0 %850
      %vm852 = vcmask 261120
      %v853 = vsel %vm852, %v849, %v851
      %v857 = vmul.f32 %v755, %v849
      %v858 = vmul.f32 %v751, %v853
      %v859 = vmul.f32 %v756, %v851
      %v860 = vperm.slane %v757, 7
      %v861 = vperm.slane %v758, 7
      %864 = vrot.lane.b32.xlu0 %v860, 33
      %v865 = vpop.permute.xlu0 %864
      %866 = vrot.lane.b32.xlu0 %v861, 33
      %v867 = vpop.permute.xlu0 %866
      %vm868 = vcmask 269312
      %v869 = vsel %vm868, %v865, %v867
      %v873 = vmul.f32 %v755, %v865
      %v874 = vmul.f32 %v751, %v869
      %v875 = vmul.f32 %v756, %v867
      %v876 = vperm.slane %v759, 0
      %v877 = vperm.slane %v760, 0
      %880 = vrot.lane.b32.xlu0 %v876, 34
      %v881 = vpop.permute.xlu0 %880
      %882 = vrot.lane.b32.xlu0 %v877, 34
      %v883 = vpop.permute.xlu0 %882
      %vm884 = vcmask 277504
      %v885 = vsel %vm884, %v881, %v883
      %v889 = vmul.f32 %v755, %v881
      %v890 = vmul.f32 %v751, %v885
      %v891 = vmul.f32 %v756, %v883
      %v895 = vrot.slane %v778, 4
      %v896 = vrot.slane %v779, 4
      %v897 = vrot.slane %v780, 4
      %898 = vrot.lane.b32.xlu0 %v895, 127
      %v899 = vpop.permute.xlu0 %898
      %900 = vrot.lane.b32.xlu0 %v896, 127
      %v901 = vpop.permute.xlu0 %900
      %902 = vrot.lane.b32.xlu0 %v897, 127
      %v903 = vpop.permute.xlu0 %902
      %vm904 = vcmask 1039360
      %v905 = vsel %vm904, %v899, %v901
      %v906 = vsel %vm904, %v901, %v903
      %912 = vrot.lane.b32.xlu0 %v794, 126
      %v913 = vpop.permute.xlu0 %912
      %914 = vrot.lane.b32.xlu0 %v795, 126
      %v915 = vpop.permute.xlu0 %914
      %916 = vrot.lane.b32.xlu0 %v796, 126
      %v917 = vpop.permute.xlu0 %916
      %vm918 = vcmask 1031168
      %v919 = vsel %vm918, %v913, %v915
      %v920 = vsel %vm918, %v915, %v917
      %v926 = vrot.slane %v810, 4
      %v927 = vrot.slane %v811, 4
      %v928 = vrot.slane %v812, 4
      %929 = vrot.lane.b32.xlu0 %v926, 112
      %v930 = vpop.permute.xlu0 %929
      %931 = vrot.lane.b32.xlu0 %v927, 112
      %v932 = vpop.permute.xlu0 %931
      %933 = vrot.lane.b32.xlu0 %v928, 112
      %v934 = vpop.permute.xlu0 %933
      %vm935 = vcmask 916480
      %v936 = vsel %vm935, %v930, %v932
      %v937 = vsel %vm935, %v932, %v934
      %943 = vrot.lane.b32.xlu0 %v825, 111
      %v944 = vpop.permute.xlu0 %943
      %945 = vrot.lane.b32.xlu0 %v826, 111
      %v946 = vpop.permute.xlu0 %945
      %947 = vrot.lane.b32.xlu0 %v827, 111
      %v948 = vpop.permute.xlu0 %947
      %vm949 = vcmask 908288
      %v950 = vsel %vm949, %v944, %v946
      %v951 = vsel %vm949, %v946, %v948
      %v957 = vrot.slane %v841, 4
      %v958 = vrot.slane %v842, 4
      %v959 = vrot.slane %v843, 4
      %960 = vrot.lane.b32.xlu0 %v957, 110
      %v961 = vpop.permute.xlu0 %960
      %962 = vrot.lane.b32.xlu0 %v958, 110
      %v963 = vpop.permute.xlu0 %962
      %964 = vrot.lane.b32.xlu0 %v959, 110
      %v965 = vpop.permute.xlu0 %964
      %vm966 = vcmask 900096
      %v967 = vsel %vm966, %v961, %v963
      %v968 = vsel %vm966, %v963, %v965
      %974 = vrot.lane.b32.xlu0 %v857, 96
      %v975 = vpop.permute.xlu0 %974
      %976 = vrot.lane.b32.xlu0 %v858, 96
      %v977 = vpop.permute.xlu0 %976
      %978 = vrot.lane.b32.xlu0 %v859, 96
      %v979 = vpop.permute.xlu0 %978
      %vm980 = vcmask 785408
      %v981 = vsel %vm980, %v975, %v977
      %v982 = vsel %vm980, %v977, %v979
      %v988 = vrot.slane %v873, 4
      %v989 = vrot.slane %v874, 4
      %v990 = vrot.slane %v875, 4
      %991 = vrot.lane.b32.xlu0 %v988, 95
      %v992 = vpop.permute.xlu0 %991
      %993 = vrot.lane.b32.xlu0 %v989, 95
      %v994 = vpop.permute.xlu0 %993
      %995 = vrot.lane.b32.xlu0 %v990, 95
      %v996 = vpop.permute.xlu0 %995
      %vm997 = vcmask 777216
      %v998 = vsel %vm997, %v992, %v994
      %v999 = vsel %vm997, %v994, %v996
      %1005 = vrot.lane.b32.xlu0 %v889, 94
      %v1006 = vpop.permute.xlu0 %1005
      %1007 = vrot.lane.b32.xlu0 %v890, 94
      %v1008 = vpop.permute.xlu0 %1007
      %1009 = vrot.lane.b32.xlu0 %v891, 94
      %v1010 = vpop.permute.xlu0 %1009
      %vm1011 = vcmask 769024
      %v1012 = vsel %vm1011, %v1006, %v1008
      %v1013 = vsel %vm1011, %v1008, %v1010
      %v1016 = vsel %vm559, %v763, %v905
      %v1017 = vsel %vm559, %v764, %v906
      %v1018 = vsel %vm559, %v919, %v936
      %v1019 = vsel %vm559, %v920, %v937
      %v1020 = vsel %vm559, %v950, %v967
      %v1021 = vsel %vm559, %v951, %v968
      %v1022 = vsel %vm559, %v981, %v998
      %v1023 = vsel %vm559, %v982, %v999
      %v1024 = vpack.c.bf16 %v1018, %v1016
      %v1025 = vpack.c.bf16 %v1019, %v1017
      %v1026 = vpack.c.bf16 %v1022, %v1020
      %v1027 = vpack.c.bf16 %v1023, %v1021
      %v1028 = vpack.c.bf16 %v1012, %v1012
      %v1029 = vpack.c.bf16 %v1013, %v1013
      %v1030 = vld [vmem:[%s7] sm:$0x3]
      %vm1031 = vcmask 293888
      %v1033 = vsel %vm1031, %v1030, 0
      %v1036 = vsel %vm655, %v1028, 0
      %v1039 = vsel %vm655, %v1029, 0
      %1041 = vmatpush.bf16.msra.mxu0 0
      %1042 = vmatpush.bf16.msra.mxu0 0
      %1043 = vmatpush.bf16.msra.mxu0 0
      %1044 = vmatpush.bf16.msra.mxu0 0
      %1045 = vmatpush.bf16.msra.mxu0 0
      %1046 = vmatpush.bf16.msra.mxu0 %v1036
      %1047 = vmatpush.bf16.msra.mxu0 %v1026
      %1048 = vmatpush.bf16.msra.mxu0 %v1024
      %1049 = vmatmul.bf16.gmra.mxu0 %v1033
      %v1050 = vpop.f32.mrf.mxu0
      %v1051 = vadd.f32 0.0, %v1050
      %v1052 = vpop.f32.mrf.mxu0
      %1053 = vdwg.mxu0
      %1054 = vmatpush.bf16.msra.mxu0 0
      %1055 = vmatpush.bf16.msra.mxu0 0
      %1056 = vmatpush.bf16.msra.mxu0 0
      %1057 = vmatpush.bf16.msra.mxu0 0
      %1058 = vmatpush.bf16.msra.mxu0 0
      %1059 = vmatpush.bf16.msra.mxu0 %v1039
      %1060 = vmatpush.bf16.msra.mxu0 %v1027
      %1061 = vmatpush.bf16.msra.mxu0 %v1025
      %1062 = vmatmul.bf16.gmra.mxu0 %v1033
      %v1063 = vpop.f32.mrf.mxu0
      %v1064 = vadd.f32 0.0, %v1063
      %v1065 = vpop.f32.mrf.mxu0
      %1066 = vdwg.mxu0
      %v1067 = vld [vmem:[%s8] sm:$0xf]
      %1069 = vset.pattern.permute.xlu0 0
      %1070 = vperm.xlu0 %1069, %v1067
      %v1071 = vpop.permute.xlu0 %1070
      %v1073 = vmul.f32 %v1051, %v1071
      %v1074 = vmul.f32 %v1064, %v1071
      %v1075 = vld [vmem:[%s9] sm:$0xf]
      %1077 = vset.pattern.permute.xlu0 0
      %1078 = vperm.xlu0 %1077, %v1075
      %v1079 = vpop.permute.xlu0 %1078
      %v1081 = vadd.f32 %v1073, %v1079
      %v1082 = vadd.f32 %v1074, %v1079
      %v1083 = vxor.u32 %v1081, 2147483648
      %v1084 = vxor.u32 %v1082, 2147483648
      %v1085 = vmul.f32 %v1083, 1.442695
      %v1086 = vpow.pop %v1085
      %v1087 = vmul.f32 %v1084, 1.442695
      %v1088 = vpow.pop %v1087
      %v1089 = vadd.f32 %v1086, 1.0
      %v1090 = vadd.f32 %v1088, 1.0
      %v1091 = vrcp.pop %v1089
      %v1092 = vmul.f32 %v1089, %v1091
      %v1093 = vsub.f32 1.0, %v1092
      %v1094 = vmul.f32 %v1091, %v1093
      %v1095 = vadd.f32 %v1091, %v1094
      %vm1096 = vweird.f32 %v1089
      %vm1097 = vweird.f32 %v1091
      %vm1098 = vmor %vm1096, %vm1097
      %v1099 = vsel %vm1098, %v1091, %v1095
      %v1100 = vand.u32 2147483647, %v1089
      %vm1101 = vcmp.eq.f32.partialorder %v1100, 8.507059e+37
      %v1102 = vand.u32 %v1089, 2147483648
      %v1103 = vor.u32 1.1754944e-38, %v1102
      %v1104 = vsel %vm1101, %v1103, %v1099
      %v1105 = vmul.f32 1.0, %v1104
      %v1106 = vrcp.pop %v1090
      %v1107 = vmul.f32 %v1090, %v1106
      %v1108 = vsub.f32 1.0, %v1107
      %v1109 = vmul.f32 %v1106, %v1108
      %v1110 = vadd.f32 %v1106, %v1109
      %vm1111 = vweird.f32 %v1090
      %vm1112 = vweird.f32 %v1106
      %vm1113 = vmor %vm1111, %vm1112
      %v1114 = vsel %vm1113, %v1106, %v1110
      %v1115 = vand.u32 2147483647, %v1090
      %vm1116 = vcmp.eq.f32.partialorder %v1115, 8.507059e+37
      %v1117 = vand.u32 %v1090, 2147483648
      %v1118 = vor.u32 1.1754944e-38, %v1117
      %v1119 = vsel %vm1116, %v1118, %v1114
      %v1120 = vmul.f32 1.0, %v1119
      %v1121 = vmul.f32 %v1081, %v1105
      %v1122 = vmul.f32 %v1082, %v1120
      %v1123 = vadd.f32 %v646, %v1121
      %v1124 = vadd.f32 %v647, %v1122
      %v1125 = vld [vmem:[%s11] sm:$0x3]
      %v1126 = vpack.c.bf16 %v1123, %v1123
      %v1127 = vpack.c.bf16 %v1124, %v1124
      %v1129 = vsel %vm651, %v1125, 0
      %v1132 = vsel %vm655, %v1126, 0
      %v1135 = vsel %vm655, %v1127, 0
      %1137 = vmatpush.bf16.msra.mxu0 0
      %1138 = vmatpush.bf16.msra.mxu0 0
      %1139 = vmatpush.bf16.msra.mxu0 0
      %1140 = vmatpush.bf16.msra.mxu0 0
      %1141 = vmatpush.bf16.msra.mxu0 0
      %1142 = vmatpush.bf16.msra.mxu0 0
      %1143 = vmatpush.bf16.msra.mxu0 0
      %1144 = vmatpush.bf16.msra.mxu0 %v1132
      %1145 = vmatmul.bf16.gmra.mxu0 %v1129
      %v1146 = vpop.f32.mrf.mxu0
      %v1147 = vadd.f32 0.0, %v1146
      %v1148 = vpop.f32.mrf.mxu0
      %1149 = vdwg.mxu0
      %1150 = vmatpush.bf16.msra.mxu0 0
      %1151 = vmatpush.bf16.msra.mxu0 0
      %1152 = vmatpush.bf16.msra.mxu0 0
      %1153 = vmatpush.bf16.msra.mxu0 0
      %1154 = vmatpush.bf16.msra.mxu0 0
      %1155 = vmatpush.bf16.msra.mxu0 0
      %1156 = vmatpush.bf16.msra.mxu0 0
      %1157 = vmatpush.bf16.msra.mxu0 %v1135
      %1158 = vmatmul.bf16.gmra.mxu0 %v1129
      %v1159 = vpop.f32.mrf.mxu0
      %v1160 = vadd.f32 0.0, %v1159
      %v1161 = vpop.f32.mrf.mxu0
      %1162 = vdwg.mxu0
      %v1163 = vsel %vm559, %v1147, %v576
      %v1164 = vsel %vm559, %v1160, %v589
      %v1165 = vld [vmem:[%s12] sm:$0xff]
      %1167 = vset.pattern.permute.xlu0 0
      %1168 = vperm.xlu0 %1167, %v1165
      %v1169 = vpop.permute.xlu0 %1168
      %v1171 = vmul.f32 %v1163, %v1169
      %v1172 = vmul.f32 %v1164, %v1169
      %v1173 = vld [vmem:[%s13] sm:$0xff]
      %1175 = vset.pattern.permute.xlu0 0
      %1176 = vperm.xlu0 %1175, %v1173
      %v1177 = vpop.permute.xlu0 %1176
      %v1179 = vadd.f32 %v1171, %v1177
      %v1180 = vadd.f32 %v1172, %v1177
      %vm1181 = vcmp.ge.f32.partialorder %v1179, 0.0
      %vm1182 = vcmp.ge.f32.partialorder %v1180, 0.0
      %v1183 = vmul.f32 %v1179, 0.1
      %v1184 = vmul.f32 %v1180, 0.1
      %v1185 = vsel %vm1181, %v1179, %v1183
      %v1186 = vsel %vm1182, %v1180, %v1184
      %v1187 = vld [vmem:[%s14] sm:$0xf]
      %v1188 = vpack.c.bf16 %v1185, %v1185
      %v1189 = vpack.c.bf16 %v1186, %v1186
      %v1191 = vsel %vm555, %v1187, 0
      %v1194 = vsel %vm559, %v1188, 0
      %v1197 = vsel %vm559, %v1189, 0
      %1199 = vmatpush.bf16.msra.mxu0 0
      %1200 = vmatpush.bf16.msra.mxu0 0
      %1201 = vmatpush.bf16.msra.mxu0 0
      %1202 = vmatpush.bf16.msra.mxu0 0
      %1203 = vmatpush.bf16.msra.mxu0 0
      %1204 = vmatpush.bf16.msra.mxu0 0
      %1205 = vmatpush.bf16.msra.mxu0 0
      %1206 = vmatpush.bf16.msra.mxu0 %v1194
      %1207 = vmatmul.bf16.gmra.mxu0 %v1191
      %v1208 = vpop.f32.mrf.mxu0
      %v1209 = vadd.f32 0.0, %v1208
      %v1210 = vpop.f32.mrf.mxu0
      %1211 = vdwg.mxu0
      %1212 = vmatpush.bf16.msra.mxu0 0
      %1213 = vmatpush.bf16.msra.mxu0 0
      %1214 = vmatpush.bf16.msra.mxu0 0
      %1215 = vmatpush.bf16.msra.mxu0 0
      %1216 = vmatpush.bf16.msra.mxu0 0
      %1217 = vmatpush.bf16.msra.mxu0 0
      %1218 = vmatpush.bf16.msra.mxu0 0
      %1219 = vmatpush.bf16.msra.mxu0 %v1197
      %1220 = vmatmul.bf16.gmra.mxu0 %v1191
      %v1221 = vpop.f32.mrf.mxu0
      %v1222 = vadd.f32 0.0, %v1221
      %v1223 = vpop.f32.mrf.mxu0
      %1224 = vdwg.mxu0
      %v1225 = vld [vmem:[%s15] sm:$0xff]
      %1227 = vset.pattern.permute.xlu0 0
      %1228 = vperm.xlu0 %1227, %v1225
      %v1229 = vpop.permute.xlu0 %1228
      %v1231 = vmul.f32 %v1209, %v1229
      %v1232 = vmul.f32 %v1222, %v1229
      %v1233 = vld [vmem:[%s16] sm:$0xff]
      %1235 = vset.pattern.permute.xlu0 0
      %1236 = vperm.xlu0 %1235, %v1233
      %v1237 = vpop.permute.xlu0 %1236
      %v1239 = vadd.f32 %v1231, %v1237
      %v1240 = vadd.f32 %v1232, %v1237
      %v1241 = vxor.u32 %v1239, 2147483648
      %v1242 = vxor.u32 %v1240, 2147483648
      %v1243 = vmul.f32 %v1241, 1.442695
      %v1244 = vpow.pop %v1243
      %v1245 = vmul.f32 %v1242, 1.442695
      %v1246 = vpow.pop %v1245
      %v1247 = vadd.f32 %v1244, 1.0
      %v1248 = vadd.f32 %v1246, 1.0
      %v1249 = vrcp.pop %v1247
      %v1250 = vmul.f32 %v1247, %v1249
      %v1251 = vsub.f32 1.0, %v1250
      %v1252 = vmul.f32 %v1249, %v1251
      %v1253 = vadd.f32 %v1249, %v1252
      %vm1254 = vweird.f32 %v1247
      %vm1255 = vweird.f32 %v1249
      %vm1256 = vmor %vm1254, %vm1255
      %v1257 = vsel %vm1256, %v1249, %v1253
      %v1258 = vand.u32 2147483647, %v1247
      %vm1259 = vcmp.eq.f32.partialorder %v1258, 8.507059e+37
      %v1260 = vand.u32 %v1247, 2147483648
      %v1261 = vor.u32 1.1754944e-38, %v1260
      %v1262 = vsel %vm1259, %v1261, %v1257
      %v1263 = vmul.f32 1.0, %v1262
      %v1264 = vrcp.pop %v1248
      %v1265 = vmul.f32 %v1248, %v1264
      %v1266 = vsub.f32 1.0, %v1265
      %v1267 = vmul.f32 %v1264, %v1266
      %v1268 = vadd.f32 %v1264, %v1267
      %vm1269 = vweird.f32 %v1248
      %vm1270 = vweird.f32 %v1264
      %vm1271 = vmor %vm1269, %vm1270
      %v1272 = vsel %vm1271, %v1264, %v1268
      %v1273 = vand.u32 2147483647, %v1248
      %vm1274 = vcmp.eq.f32.partialorder %v1273, 8.507059e+37
      %v1275 = vand.u32 %v1248, 2147483648
      %v1276 = vor.u32 1.1754944e-38, %v1275
      %v1277 = vsel %vm1274, %v1276, %v1272
      %v1278 = vmul.f32 1.0, %v1277
      %v1279 = vmul.f32 %v1239, %v1263
      %v1280 = vmul.f32 %v1240, %v1278
      %1281 = vst [vmem:[%s548] sm:$0xff] %v1279
      %1282 = vst [vmem:[%s548 + $0x8] sm:$0xff] %v1280
      %p1283 = scmp.lt.s32.totalorder %s28, 1
      %s1284 = scalar_select %p1283, %s28, 1
      %s1285 = smul.addr %s1284, 2
      %s1286 = smul.addr %s1285, 8
      %s1287 = scalar_lea.vmem %s17, %s1286
      // Predicated region
      $region89: #{bottleneck_csp_forward.1} parent=87 // pred_check
        %p1288 = pneg %p408
      $region90: #{bottleneck_csp_forward.1} parent=87 // pred_check_branch
        %1290 = sbr.rel (%p1288) target = $region92
      $region91: #{bottleneck_csp_forward.1} parent=87 // pred_region
        _
      $region92: #{bottleneck_csp_forward.1} parent=87 // pred_fallthru
        _
    $region88: #{bottleneck_csp_forward.1} parent=5 // pred_fallthru
      _
    %p1291 = scmp.le.s32.totalorder 2, %s23
    // Predicated region
    $region93: #{bottleneck_csp_forward.1} parent=5 // pred_check
      %p1292 = pneg %p1291
    $region94: #{bottleneck_csp_forward.1} parent=5 // pred_check_branch
      %1294 = sbr.rel (%p1292) target = $region96
    $region95: #{bottleneck_csp_forward.1} parent=5 // pred_region
      %s1295 = ssub.s32 %s23, 2
      // Predicated region
      $region97: #{bottleneck_csp_forward.1} parent=95 // pred_check
        %p1296 = pneg %p414
      $region98: #{bottleneck_csp_forward.1} parent=95 // pred_check_branch
        %1298 = sbr.rel (%p1296) target = $region100
      $region99: #{bottleneck_csp_forward.1} parent=95 // pred_region
        %p1299 = scmp.lt.s32.totalorder %s29, 1
        %s1300 = scalar_select %p1299, %s29, 1
        %s1301 = smul.addr %s1300, 2
        %s1302 = smul.addr %s1301, 8
        %s1303 = scalar_lea.vmem %s17, %s1302
      $region100: #{bottleneck_csp_forward.1} parent=95 // pred_fallthru
        _
    $region96: #{bottleneck_csp_forward.1} parent=5 // pred_fallthru
      _
  $region6: #{bottleneck_csp_forward.1} parent=0 // loop_footer
    %s27 = sadd.s32 1, %s23
  $region7: #{bottleneck_csp_forward.1} parent=0 // loop_footer_branch
    %22 = sbr.rel target = $region3
  $region8: #{bottleneck_csp_forward.1} parent=0 // loop_exit
    _

</llo_original>
